<compile_context>
chip_gen: v7x
topology: tpu7x:2x2x1
jax: 0.10.0
libtpu: 0.0.40
codegen_flags: <defaults>
</compile_context>

<pallas_src>
import functools

import jax
import jax.numpy as jnp
import numpy as np
from jax.experimental import pallas as pl
from jax.experimental.pallas import tpu as pltpu


def _round_up(x, m):
    return ((x + m - 1) // m) * m


# ----------------------------------------------------------------------------
# Hardware queries (defensive: fall back to conservative values)
# ----------------------------------------------------------------------------
def _tpu_vmem_capacity():
    try:
        info = pltpu.get_tpu_info()
        for name in ("vmem_capacity_bytes", "vmem_size_bytes", "vmem_bytes"):
            v = getattr(info, name, None)
            if v:
                return int(v)
    except Exception:
        pass
    return 64 << 20  # conservative default = v7x physical VMEM


def _tpu_num_tensorcores():
    try:
        info = pltpu.get_tpu_info()
        for name in ("num_cores", "core_count", "num_tensorcores",
                     "tensorcore_count", "num_cores_per_chip"):
            v = getattr(info, name, None)
            if v:
                return int(v)
    except Exception:
        pass
    return 1  # safe default: never batch-split (correct for v5e/v6e)


def _vmem_limit_bytes(need, cap):
    # Only ever raises the scoped limit above the 32 MiB default; never constrains below need.
    return int(min(0.92 * cap, max(need + (16 << 20), 48 << 20)))


# ----------------------------------------------------------------------------
# Kernel 1: tiled matmul + bias  (decoder)
# ----------------------------------------------------------------------------
def _matmul_bias_kernel(x_ref, w_ref, b_ref, o_ref):
    """(TN, K) bf16 @ (K, TM) bf16 -> f32, + f32 bias (1, TM)."""
    o_ref[...] = (
        jnp.dot(x_ref[...], w_ref[...], preferred_element_type=jnp.float32)
        + b_ref[...]
    )


def _pick_row_tile(n):
    if n <= 1024:
        return _round_up(max(n, 8), 8)          # single row tile, no pad when n % 8 == 0
    for t in (1024, 512, 256):
        if n % t == 0:
            return t
    return 1024                                  # pad rows once (rare)


def _pick_col_tile(m):
    mp = _round_up(m, 128)
    for t in (512, 384, 256, 128):
        if mp % t == 0:
            return t, mp
    return 128, mp


def matmul_bias_pallas(x, w, b):
    """x: (N, K); w: (K, M); b: (M,) or (1, M).  Returns f32 (N, M) = x @ w + b.
    Inputs are cast to bf16 for the MXU, accumulation is f32."""
    N, K = x.shape
    M = w.shape[1]
    TN = _pick_row_tile(N)
    TM, Mp = _pick_col_tile(M)
    Np = _round_up(N, TN)

    xb = x if x.dtype == jnp.bfloat16 else x.astype(jnp.bfloat16)
    if Np != N:
        xb = jnp.pad(xb, ((0, Np - N), (0, 0)))
    wb = w if w.dtype == jnp.bfloat16 else w.astype(jnp.bfloat16)
    if Mp != M:
        wb = jnp.pad(wb, ((0, 0), (0, Mp - M)))
    b2 = jnp.asarray(b, jnp.float32).reshape(1, -1)
    if b2.shape[1] != Mp:
        b2 = jnp.pad(b2, ((0, 0), (0, Mp - b2.shape[1])))

    n_i, n_j = Np // TN, Mp // TM
    # Choose loop order so the operand that would be re-streamed the most stays resident:
    #   rows-inner  -> W column tile fetched once per j, x re-streamed n_j times
    #   cols-inner  -> x row tile fetched once per i,  W re-streamed n_i times
    w_bytes = K * Mp * 2
    x_bytes = Np * K * 2
    rows_inner = (w_bytes + x_bytes * n_j) <= (x_bytes + w_bytes * n_i)
    if rows_inner:
        grid = (n_j, n_i)
        x_map = lambda j, i: (i, 0)
        w_map = lambda j, i: (0, j)
        b_map = lambda j, i: (0, j)
        o_map = lambda j, i: (i, j)
    else:
        grid = (n_i, n_j)
        x_map = lambda i, j: (i, 0)
        w_map = lambda i, j: (0, j)
        b_map = lambda i, j: (0, j)
        o_map = lambda i, j: (i, j)

    need = 2 * (TN * K * 2 + K * TM * 2 + TM * 4 + TN * TM * 4) + (2 << 20)
    cap = _tpu_vmem_capacity()

    out = pl.pallas_call(
        _matmul_bias_kernel,
        out_shape=jax.ShapeDtypeStruct((Np, Mp), jnp.float32),
        grid_spec=pltpu.PrefetchScalarGridSpec(
            num_scalar_prefetch=0,
            grid=grid,
            in_specs=[
                pl.BlockSpec((TN, K), x_map),
                pl.BlockSpec((K, TM), w_map),
                pl.BlockSpec((1, TM), b_map),
            ],
            out_specs=pl.BlockSpec((TN, TM), o_map),
        ),
        compiler_params=pltpu.CompilerParams(
            dimension_semantics=("parallel", "parallel"),
            vmem_limit_bytes=_vmem_limit_bytes(need, cap)),
        cost_estimate=pl.CostEstimate(
            flops=int(2 * Np * K * Mp),
            transcendentals=0,
            bytes_accessed=int(Np * K * 2 + K * Mp * 2 + Mp * 4 + Np * Mp * 4)),
    )(xb, wb, b2)
    return out[:N, :M]


# ----------------------------------------------------------------------------
# Kernel 2: fused LSTM layer (chunk input projection + serial recurrence)
# ----------------------------------------------------------------------------
def _lstm_fused_kernel(x_ref, wih_ref, whh_ref, b_ref, out_ref, h_sc, c_sc,
                       *, tc, bb, hp):
    """Grid = (batch blocks ["parallel"], time chunks ["arbitrary"]).

    x_ref:   (tc*bb, in_dim_p) bf16  raw activations for this chunk (time-major in block)
    wih_ref: (in_dim_p, 4*hp)  bf16  input->gates weights (resident)
    whh_ref: (hp, 4*hp)        bf16  hidden->gates weights (resident)
    b_ref:   (1, 4*hp)         f32   b_ih + b_hh (gate-padded)
    out_ref: (tc*bb, hp)       bf16  h_t for each timestep of the chunk
    h_sc/c_sc: (bb, hp)        f32   recurrent state carried across time chunks
    Gate order (PyTorch nn.LSTM): i, f, g, o — each block is hp-wide (128-aligned).
    """
    @pl.when(pl.program_id(1) == 0)
    def _():
        h_sc[...] = jnp.zeros_like(h_sc)
        c_sc[...] = jnp.zeros_like(c_sc)

    # Fused input projection for the whole chunk (one MXU GEMM, tc*bb rows): the 4H-wide
    # f32 gate tensor never round-trips through HBM.
    g_all = (jnp.dot(x_ref[...], wih_ref[...],
                     preferred_element_type=jnp.float32)
             + b_ref[...])                                  # (tc*bb, 4hp) f32

    whh = whh_ref[...]          # (hp, 4hp) bf16, resident in VMEM
    h = h_sc[...]               # (bb, hp) f32
    c = c_sc[...]               # (bb, hp) f32

    # Static unroll over the chunk; tc is sized to the VMEM budget by the wrapper.
    # TODO(synk): if bundle dumps show vld/vst saturation from vreg spills at large bb*hp,
    # switch to lax.fori_loop(..., unroll=True) to bound live ranges.
    for tt in range(tc):
        gates = g_all[tt * bb:(tt + 1) * bb, :] + jnp.dot(
            h.astype(jnp.bfloat16), whh, preferred_element_type=jnp.float32)
        # sigmoid(x) = 0.5*tanh(0.5*x)+0.5 : one EUP push per gate instead of exp+recip.
        i_g = 0.5 * jnp.tanh(0.5 * gates[:, 0 * hp:1 * hp]) + 0.5
        f_g = 0.5 * jnp.tanh(0.5 * gates[:, 1 * hp:2 * hp]) + 0.5
        g_g = jnp.tanh(gates[:, 2 * hp:3 * hp])
        o_g = 0.5 * jnp.tanh(0.5 * gates[:, 3 * hp:4 * hp]) + 0.5
        c = f_g * c + i_g * g_g
        h = o_g * jnp.tanh(c)
        out_ref[tt * bb:(tt + 1) * bb, :] = h.astype(out_ref.dtype)

    h_sc[...] = h
    c_sc[...] = c


def _recurrent_vmem_bytes(tc, bb, in_dim_p, hp):
    x_b = 2 * tc * bb * in_dim_p * 2          # bf16 chunk, double-buffered
    wih_b = 2 * in_dim_p * 4 * hp * 2         # resident weights (budget 2 buffers)
    whh_b = 2 * hp * 4 * hp * 2
    out_b = 2 * tc * bb * hp * 2
    g_b = tc * bb * 4 * hp * 4                # in-kernel f32 gate chunk intermediate
    state_b = 2 * bb * hp * 4
    return x_b + wih_b + whh_b + out_b + g_b + state_b + (2 << 20)


def lstm_layer_pallas(x, wih_t, whh_t, bias, *, hp, in_dim_p, tc, bb):
    """x: (nb, Tpad*bb, in_dim_p) bf16, time-major within each batch block.
    Returns (nb, Tpad*bb, hp) bf16 hidden states."""
    nb, rows, _ = x.shape
    ntc = rows // (tc * bb)
    kernel = functools.partial(_lstm_fused_kernel, tc=tc, bb=bb, hp=hp)
    need = _recurrent_vmem_bytes(tc, bb, in_dim_p, hp)
    cap = _tpu_vmem_capacity()
    return pl.pallas_call(
        kernel,
        out_shape=jax.ShapeDtypeStruct((nb, rows, hp), jnp.bfloat16),
        grid_spec=pltpu.PrefetchScalarGridSpec(
            num_scalar_prefetch=0,
            grid=(nb, ntc),
            in_specs=[
                pl.BlockSpec((None, tc * bb, in_dim_p), lambda b, t: (b, t, 0)),
                pl.BlockSpec((in_dim_p, 4 * hp), lambda b, t: (0, 0)),
                pl.BlockSpec((hp, 4 * hp), lambda b, t: (0, 0)),
                pl.BlockSpec((1, 4 * hp), lambda b, t: (0, 0)),
            ],
            out_specs=pl.BlockSpec((None, tc * bb, hp), lambda b, t: (b, t, 0)),
            scratch_shapes=[
                pltpu.VMEM((bb, hp), jnp.float32),   # h state
                pltpu.VMEM((bb, hp), jnp.float32),   # c state
            ],
        ),
        compiler_params=pltpu.CompilerParams(
            dimension_semantics=("parallel", "arbitrary"),
            vmem_limit_bytes=_vmem_limit_bytes(need, cap)),
        cost_estimate=pl.CostEstimate(
            flops=int(2 * nb * rows * in_dim_p * 4 * hp
                      + 2 * nb * rows * hp * 4 * hp
                      + 10 * nb * rows * hp),
            transcendentals=int(5 * nb * rows * hp),
            bytes_accessed=int(nb * rows * in_dim_p * 2
                               + (in_dim_p + hp) * 4 * hp * 2
                               + nb * rows * hp * 2)),
    )(x, wih_t, whh_t, bias)


# ----------------------------------------------------------------------------
# Parameter prep helpers (gate-block padding so i/f/g/o slices are 128-aligned)
# ----------------------------------------------------------------------------
def _gate_pad_cols(w_t, h, hp):
    """(K, 4h) -> (K, 4hp): each gate block placed at column offset k*hp, rest zero."""
    if h == hp:
        return w_t
    k_dim = w_t.shape[0]
    out = jnp.zeros((k_dim, 4 * hp), w_t.dtype)
    for k in range(4):
        out = out.at[:, k * hp:k * hp + h].set(w_t[:, k * h:(k + 1) * h])
    return out


def _gate_pad_vec(b, h, hp):
    if h == hp:
        return b
    out = jnp.zeros((4 * hp,), b.dtype)
    for k in range(4):
        out = out.at[k * hp:k * hp + h].set(b[k * h:(k + 1) * h])
    return out


# ----------------------------------------------------------------------------
# Model wrapper (eval-mode forward of the PyTorch `LSTM` module)
# ----------------------------------------------------------------------------
class LSTMPallas:
    def __init__(self, d_input, d_output, n_layer, d_hidden, key, time_chunk=None):
        if not isinstance(d_hidden, (list, tuple)):
            d_hidden = [d_hidden]
        self.d_input = d_input
        self.d_output = d_output
        self.n_layer = n_layer
        self.d_hidden = list(d_hidden)
        self.time_chunk = time_chunk     # None -> auto (VMEM-capacity aware)

        # ---- raw f32 params (PyTorch nn.LSTM default init), kept for the reference ----
        self.layers_raw = []
        for l in range(n_layer):
            in_dim = d_input if l == 0 else d_hidden[l - 1]
            h = d_hidden[l]
            k = 1.0 / np.sqrt(h)
            key, k1, k2, k3, k4 = jax.random.split(key, 5)
            self.layers_raw.append(dict(
                w_ih=jax.random.uniform(k1, (4 * h, in_dim), jnp.float32, -k, k),
                w_hh=jax.random.uniform(k2, (4 * h, h), jnp.float32, -k, k),
                b_ih=jax.random.uniform(k3, (4 * h,), jnp.float32, -k, k),
                b_hh=jax.random.uniform(k4, (4 * h,), jnp.float32, -k, k),
            ))
        kd = 1.0 / np.sqrt(d_hidden[-1])
        key, k1, k2 = jax.random.split(key, 3)
        self.dec_w = jax.random.uniform(k1, (d_output, d_hidden[-1]), jnp.float32, -kd, kd)
        self.dec_b = jax.random.uniform(k2, (d_output,), jnp.float32, -kd, kd)

        # ---- kernel-side params: pre-transposed, gate/lane padded, bf16, built ONCE ----
        self.layers = []
        for l, p in enumerate(self.layers_raw):
            h = d_hidden[l]
            hp = _round_up(h, 128)
            in_dim = d_input if l == 0 else d_hidden[l - 1]
            in_dim_p = _round_up(in_dim, 128)    # layer 0 contraction dim padded to 128 too

            wih_t = _gate_pad_cols(p["w_ih"].T, h, hp)                 # (in_dim, 4hp)
            wih_t = jnp.pad(wih_t, ((0, in_dim_p - in_dim), (0, 0)))   # (in_dim_p, 4hp)
            whh_t = _gate_pad_cols(p["w_hh"].T, h, hp)                 # (h, 4hp)
            whh_t = jnp.pad(whh_t, ((0, hp - h), (0, 0)))              # (hp, 4hp)
            bias = _gate_pad_vec(p["b_ih"] + p["b_hh"], h, hp)         # (4hp,)

            self.layers.append(dict(
                hp=hp,
                in_dim_p=in_dim_p,
                wih_t=wih_t.astype(jnp.bfloat16),
                whh_t=whh_t.astype(jnp.bfloat16),
                bias=bias.reshape(1, 4 * hp).astype(jnp.float32),
            ))

        h_last = d_hidden[-1]
        hp_last = _round_up(h_last, 128)
        dout_p = _round_up(d_output, 128)
        dec_wt = jnp.zeros((hp_last, dout_p), jnp.float32)
        dec_wt = dec_wt.at[:h_last, :d_output].set(self.dec_w.T)
        self.dec_wt_p = dec_wt.astype(jnp.bfloat16)                    # (hp_last, dout_p)
        self.dec_b_p = jnp.zeros((1, dout_p), jnp.float32).at[0, :d_output].set(self.dec_b)
        self.hp_last = hp_last

    def __call__(self, src):
        """src: (B, T, d_input) batch-first (PyTorch layout). Returns (B, T, d_output)."""
        B, T, _ = src.shape
        Bp = _round_up(B, 8)

        n_cores = _tpu_num_tensorcores()
        vmem_cap = _tpu_vmem_capacity()

        # Batch-split only when megacore parallelism exists AND each half keeps >=256 rows
        # (never split on single-TC v5e/v6e; only large-batch v7x benefits).
        if n_cores >= 2 and Bp % 16 == 0 and (Bp // 2) >= 256:
            nb = 2
        else:
            nb = 1
        bb = Bp // nb

        # Time chunk: amortize ~0.35us/grid-step; sized to the detected VMEM capacity
        # (v5e/v6e 128 MiB -> larger chunks, v7x 64 MiB -> smaller), shrunk if the resident
        # Wih/Whh + chunk buffers would blow the budget.
        tc = self.time_chunk
        if tc is None:
            tc = 16 if vmem_cap >= (96 << 20) else 8
        tc = max(1, min(tc, T))
        budget = int(vmem_cap * 0.6)

        def _worst_need(t):
            return max(_recurrent_vmem_bytes(t, bb, p["in_dim_p"], p["hp"])
                       for p in self.layers)

        while tc > 1 and _worst_need(tc) > budget:
            tc //= 2
        Tpad = _round_up(T, tc)

        # ---- entry: single transpose/pad/cast into the (nb, Tpad*bb, feat) bf16 layout ----
        din_p = self.layers[0]["in_dim_p"]
        x = jnp.transpose(jnp.asarray(src, jnp.float32), (1, 0, 2))     # (T, B, Din)
        x = jnp.pad(x, ((0, Tpad - T), (0, Bp - B), (0, din_p - self.d_input)))
        x = x.reshape(Tpad, nb, bb, din_p).transpose(1, 0, 2, 3)
        x = x.reshape(nb, Tpad * bb, din_p).astype(jnp.bfloat16)

        # ---- stacked LSTM layers: fused input projection + recurrence, bf16 activations ----
        for p in self.layers:
            x = lstm_layer_pallas(x, p["wih_t"], p["whh_t"], p["bias"],
                                  hp=p["hp"], in_dim_p=p["in_dim_p"], tc=tc, bb=bb)

        # ---- decoder GEMM (f32 output kept for exact module semantics) ----
        if nb == 1:
            rows = x[0, :T * Bp]         # drop trailing time padding: contiguous, free slice
            dec = matmul_bias_pallas(rows, self.dec_wt_p, self.dec_b_p)
            dec = dec.reshape(T, Bp, -1)[:, :B, :self.d_output]
        else:
            rows = x.reshape(nb * Tpad * bb, self.hp_last)
            dec = matmul_bias_pallas(rows, self.dec_wt_p, self.dec_b_p)
            dec = dec.reshape(nb, Tpad, bb, -1).transpose(1, 0, 2, 3)
            dec = dec.reshape(Tpad, Bp, -1)[:T, :B, :self.d_output]

        out = jnp.transpose(dec, (1, 0, 2))                             # (B, T, d_out)
        # output_fn: identity (see TODO at top of file)
        return out


# ----------------------------------------------------------------------------
# Pure-JAX reference (mirrors the kernel's bf16-matmul / f32-accumulate precision)
# ----------------------------------------------------------------------------
def _reference_forward(model, src):
    def bdot(a, b):
        return jnp.dot(a.astype(jnp.bfloat16), b.astype(jnp.bfloat16),
                       preferred_element_type=jnp.float32)

    x = jnp.asarray(src, jnp.float32)                 # (B, T, D)
    B, T, _ = x.shape
    x = jnp.transpose(x, (1, 0, 2))                   # (T, B, D) time-major
    for p in model.layers_raw:
        H = p["w_hh"].shape[1]
        wih_t, whh_t = p["w_ih"].T, p["w_hh"].T
        bias = p["b_ih"] + p["b_hh"]
        g_all = (bdot(x.reshape(T * B, -1), wih_t) + bias).reshape(T, B, 4 * H)

        def step(carry, g_t):
            h, c = carry
            gates = g_t + bdot(h, whh_t)
            i = jax.nn.sigmoid(gates[:, :H])
            f = jax.nn.sigmoid(gates[:, H:2 * H])
            g = jnp.tanh(gates[:, 2 * H:3 * H])
            o = jax.nn.sigmoid(gates[:, 3 * H:])
            c = f * c + i * g
            h = o * jnp.tanh(c)
            return (h, c), h

        h0 = jnp.zeros((B, H), jnp.float32)
        _, hs = jax.lax.scan(step, (h0, h0), g_all)
        x = hs                                        # (T, B, H)

    dec = bdot(x.reshape(T * B, -1), model.dec_w.T) + model.dec_b
    return jnp.transpose(dec.reshape(T, B, -1), (1, 0, 2))


# ----------------------------------------------------------------------------
if __name__ == "__main__":
    B, T = 2, 8
    d_input, d_hidden, d_output, n_layer = 16, [32, 32], 4, 2

    key = jax.random.PRNGKey(0)
    key, k_src, k_model = jax.random.split(key, 3)
    src = jax.random.normal(k_src, (B, T, d_input), jnp.float32)

    model = LSTMPallas(d_input, d_output, n_layer, d_hidden, k_model)

    out = jax.block_until_ready(model(src))
    ref = jax.block_until_ready(_reference_forward(model, src))

    np.testing.assert_allclose(np.asarray(out), np.asarray(ref), rtol=2e-3, atol=2e-3)
    assert out.shape == (B, T, d_output)
    print("KERNEL_OK")
</pallas_src>

<mosaic_0001>
module attributes {stable_mosaic.version = 11 : i64} {
  func.func @_lstm_fused_kernel(%arg0: i32, %arg1: i32, %arg2: memref<1x64x128xbf16, #tpu.memory_space<vmem>>, %arg3: memref<128x512xbf16, #tpu.memory_space<vmem>>, %arg4: memref<128x512xbf16, #tpu.memory_space<vmem>>, %arg5: memref<1x512xf32, #tpu.memory_space<vmem>>, %arg6: memref<1x64x128xbf16, #tpu.memory_space<vmem>>, %arg7: memref<8x128xf32, #tpu.memory_space<vmem>>, %arg8: memref<8x128xf32, #tpu.memory_space<vmem>>) attributes {dimension_semantics = [#tpu.dimension_semantics<parallel>, #tpu.dimension_semantics<arbitrary>], iteration_bounds = array<i64: 1, 1>, scalar_prefetch = 0 : i64, scratch_operands = 2 : i64, tpu.core_type = #tpu.core_type<tc>, window_params = [{transform_indices = @transform_0, window_bounds = array<i64: 1, 64, 128>}, {pipeline_mode = #tpu.pipeline_mode<synchronous>, transform_indices = @transform_1, window_bounds = array<i64: 128, 512>}, {pipeline_mode = #tpu.pipeline_mode<synchronous>, transform_indices = @transform_2, window_bounds = array<i64: 128, 512>}, {pipeline_mode = #tpu.pipeline_mode<synchronous>, transform_indices = @transform_3, window_bounds = array<i64: 1, 512>}, {transform_indices = @transform_4, window_bounds = array<i64: 1, 64, 128>}]} {
    %c0_i32 = arith.constant 0 : i32
    %0 = arith.cmpi eq, %arg1, %c0_i32 : i32
    %1 = arith.extui %0 : i1 to i32
    %c0_i32_0 = arith.constant 0 : i32
    %2 = arith.cmpi ne, %1, %c0_i32_0 : i32
    scf.if %2 {
      %cst_114 = arith.constant 0.000000e+00 : f32
      %327 = vector.broadcast %cst_114 : f32 to vector<8x128xf32>
      %c0_115 = arith.constant 0 : index
      %c0_116 = arith.constant 0 : index
      %328 = vector.load %arg7[%c0_115, %c0_116] : memref<8x128xf32, #tpu.memory_space<vmem>>, vector<8x128xf32>
      tpu.vector_store %arg7[%c0_115, %c0_116], %327 {strides = array<i32>} : memref<8x128xf32, #tpu.memory_space<vmem>>, vector<8x128xf32>,
      %cst_117 = arith.constant 0.000000e+00 : f32
      %329 = vector.broadcast %cst_117 : f32 to vector<8x128xf32>
      %c0_118 = arith.constant 0 : index
      %c0_119 = arith.constant 0 : index
      %330 = vector.load %arg8[%c0_118, %c0_119] : memref<8x128xf32, #tpu.memory_space<vmem>>, vector<8x128xf32>
      tpu.vector_store %arg8[%c0_118, %c0_119], %329 {strides = array<i32>} : memref<8x128xf32, #tpu.memory_space<vmem>>, vector<8x128xf32>,
    } else {
    }
    %c0 = arith.constant 0 : index
    %c0_1 = arith.constant 0 : index
    %c0_2 = arith.constant 0 : index
    %3 = vector.load %arg2[%c0, %c0_1, %c0_2] : memref<1x64x128xbf16, #tpu.memory_space<vmem>>, vector<1x64x128xbf16>
    %4 = vector.shape_cast %3 : vector<1x64x128xbf16> to vector<64x128xbf16>
    %c0_3 = arith.constant 0 : index
    %c0_4 = arith.constant 0 : index
    %5 = vector.load %arg3[%c0_3, %c0_4] : memref<128x512xbf16, #tpu.memory_space<vmem>>, vector<128x512xbf16>
    %cst = arith.constant dense<0.000000e+00> : vector<64x512xf32>
    %6 = tpu.matmul %4, %5, %cst {dimension_numbers = #tpu.dot_dimension_numbers<[1], [0], [0], [1], [0, 0, 1, 1], [], []>} : vector<64x128xbf16>, vector<128x512xbf16>, vector<64x512xf32> -> vector<64x512xf32>
    %c0_5 = arith.constant 0 : index
    %c0_6 = arith.constant 0 : index
    %7 = vector.load %arg5[%c0_5, %c0_6] : memref<1x512xf32, #tpu.memory_space<vmem>>, vector<1x512xf32>
    %8 = vector.broadcast %7 : vector<1x512xf32> to vector<64x512xf32>
    %9 = arith.addf %6, %8 : vector<64x512xf32>
    %c0_7 = arith.constant 0 : index
    %c0_8 = arith.constant 0 : index
    %10 = vector.load %arg4[%c0_7, %c0_8] : memref<128x512xbf16, #tpu.memory_space<vmem>>, vector<128x512xbf16>
    %c0_9 = arith.constant 0 : index
    %c0_10 = arith.constant 0 : index
    %11 = vector.load %arg7[%c0_9, %c0_10] : memref<8x128xf32, #tpu.memory_space<vmem>>, vector<8x128xf32>
    %c0_11 = arith.constant 0 : index
    %c0_12 = arith.constant 0 : index
    %12 = vector.load %arg8[%c0_11, %c0_12] : memref<8x128xf32, #tpu.memory_space<vmem>>, vector<8x128xf32>
    %13 = vector.extract_strided_slice %9 {offsets = [0, 0], sizes = [8, 512], strides = [1, 1]} : vector<64x512xf32> to vector<8x512xf32>
    %14 = arith.truncf %11 : vector<8x128xf32> to vector<8x128xbf16>
    %cst_13 = arith.constant dense<0.000000e+00> : vector<8x512xf32>
    %15 = tpu.matmul %14, %10, %cst_13 {dimension_numbers = #tpu.dot_dimension_numbers<[1], [0], [0], [1], [0, 0, 1, 1], [], []>} : vector<8x128xbf16>, vector<128x512xbf16>, vector<8x512xf32> -> vector<8x512xf32>
    %16 = arith.addf %13, %15 : vector<8x512xf32>
    %17 = vector.extract_strided_slice %16 {offsets = [0, 0], sizes = [8, 128], strides = [1, 1]} : vector<8x512xf32> to vector<8x128xf32>
    %cst_14 = arith.constant 5.000000e-01 : f32
    %18 = vector.broadcast %cst_14 : f32 to vector<8x128xf32>
    %19 = arith.mulf %18, %17 : vector<8x128xf32>
    %20 = math.tanh %19 : vector<8x128xf32>
    %cst_15 = arith.constant 5.000000e-01 : f32
    %21 = vector.broadcast %cst_15 : f32 to vector<8x128xf32>
    %22 = arith.mulf %21, %20 : vector<8x128xf32>
    %cst_16 = arith.constant 5.000000e-01 : f32
    %23 = vector.broadcast %cst_16 : f32 to vector<8x128xf32>
    %24 = arith.addf %22, %23 : vector<8x128xf32>
    %25 = vector.extract_strided_slice %16 {offsets = [0, 128], sizes = [8, 128], strides = [1, 1]} : vector<8x512xf32> to vector<8x128xf32>
    %cst_17 = arith.constant 5.000000e-01 : f32
    %26 = vector.broadcast %cst_17 : f32 to vector<8x128xf32>
    %27 = arith.mulf %26, %25 : vector<8x128xf32>
    %28 = math.tanh %27 : vector<8x128xf32>
    %cst_18 = arith.constant 5.000000e-01 : f32
    %29 = vector.broadcast %cst_18 : f32 to vector<8x128xf32>
    %30 = arith.mulf %29, %28 : vector<8x128xf32>
    %cst_19 = arith.constant 5.000000e-01 : f32
    %31 = vector.broadcast %cst_19 : f32 to vector<8x128xf32>
    %32 = arith.addf %30, %31 : vector<8x128xf32>
    %33 = vector.extract_strided_slice %16 {offsets = [0, 256], sizes = [8, 128], strides = [1, 1]} : vector<8x512xf32> to vector<8x128xf32>
    %34 = math.tanh %33 : vector<8x128xf32>
    %35 = vector.extract_strided_slice %16 {offsets = [0, 384], sizes = [8, 128], strides = [1, 1]} : vector<8x512xf32> to vector<8x128xf32>
    %cst_20 = arith.constant 5.000000e-01 : f32
    %36 = vector.broadcast %cst_20 : f32 to vector<8x128xf32>
    %37 = arith.mulf %36, %35 : vector<8x128xf32>
    %38 = math.tanh %37 : vector<8x128xf32>
    %cst_21 = arith.constant 5.000000e-01 : f32
    %39 = vector.broadcast %cst_21 : f32 to vector<8x128xf32>
    %40 = arith.mulf %39, %38 : vector<8x128xf32>
    %cst_22 = arith.constant 5.000000e-01 : f32
    %41 = vector.broadcast %cst_22 : f32 to vector<8x128xf32>
    %42 = arith.addf %40, %41 : vector<8x128xf32>
    %43 = arith.mulf %32, %12 : vector<8x128xf32>
    %44 = arith.mulf %24, %34 : vector<8x128xf32>
    %45 = arith.addf %43, %44 : vector<8x128xf32>
    %46 = math.tanh %45 : vector<8x128xf32>
    %47 = arith.mulf %42, %46 : vector<8x128xf32>
    %48 = arith.truncf %47 : vector<8x128xf32> to vector<8x128xbf16>
    %c0_23 = arith.constant 0 : index
    %c0_24 = arith.constant 0 : index
    %c0_25 = arith.constant 0 : index
    %49 = vector.load %arg6[%c0_23, %c0_24, %c0_25] : memref<1x64x128xbf16, #tpu.memory_space<vmem>>, vector<1x8x128xbf16>
    %50 = vector.shape_cast %49 : vector<1x8x128xbf16> to vector<8x128xbf16>
    %51 = vector.shape_cast %48 : vector<8x128xbf16> to vector<1x8x128xbf16>
    tpu.vector_store %arg6[%c0_23, %c0_24, %c0_25], %51 {strides = array<i32>} : memref<1x64x128xbf16, #tpu.memory_space<vmem>>, vector<1x8x128xbf16>,
    %52 = vector.extract_strided_slice %9 {offsets = [8, 0], sizes = [8, 512], strides = [1, 1]} : vector<64x512xf32> to vector<8x512xf32>
    %53 = arith.truncf %47 : vector<8x128xf32> to vector<8x128xbf16>
    %cst_26 = arith.constant dense<0.000000e+00> : vector<8x512xf32>
    %54 = tpu.matmul %53, %10, %cst_26 {dimension_numbers = #tpu.dot_dimension_numbers<[1], [0], [0], [1], [0, 0, 1, 1], [], []>} : vector<8x128xbf16>, vector<128x512xbf16>, vector<8x512xf32> -> vector<8x512xf32>
    %55 = arith.addf %52, %54 : vector<8x512xf32>
    %56 = vector.extract_strided_slice %55 {offsets = [0, 0], sizes = [8, 128], strides = [1, 1]} : vector<8x512xf32> to vector<8x128xf32>
    %cst_27 = arith.constant 5.000000e-01 : f32
    %57 = vector.broadcast %cst_27 : f32 to vector<8x128xf32>
    %58 = arith.mulf %57, %56 : vector<8x128xf32>
    %59 = math.tanh %58 : vector<8x128xf32>
    %cst_28 = arith.constant 5.000000e-01 : f32
    %60 = vector.broadcast %cst_28 : f32 to vector<8x128xf32>
    %61 = arith.mulf %60, %59 : vector<8x128xf32>
    %cst_29 = arith.constant 5.000000e-01 : f32
    %62 = vector.broadcast %cst_29 : f32 to vector<8x128xf32>
    %63 = arith.addf %61, %62 : vector<8x128xf32>
    %64 = vector.extract_strided_slice %55 {offsets = [0, 128], sizes = [8, 128], strides = [1, 1]} : vector<8x512xf32> to vector<8x128xf32>
    %cst_30 = arith.constant 5.000000e-01 : f32
    %65 = vector.broadcast %cst_30 : f32 to vector<8x128xf32>
    %66 = arith.mulf %65, %64 : vector<8x128xf32>
    %67 = math.tanh %66 : vector<8x128xf32>
    %cst_31 = arith.constant 5.000000e-01 : f32
    %68 = vector.broadcast %cst_31 : f32 to vector<8x128xf32>
    %69 = arith.mulf %68, %67 : vector<8x128xf32>
    %cst_32 = arith.constant 5.000000e-01 : f32
    %70 = vector.broadcast %cst_32 : f32 to vector<8x128xf32>
    %71 = arith.addf %69, %70 : vector<8x128xf32>
    %72 = vector.extract_strided_slice %55 {offsets = [0, 256], sizes = [8, 128], strides = [1, 1]} : vector<8x512xf32> to vector<8x128xf32>
    %73 = math.tanh %72 : vector<8x128xf32>
    %74 = vector.extract_strided_slice %55 {offsets = [0, 384], sizes = [8, 128], strides = [1, 1]} : vector<8x512xf32> to vector<8x128xf32>
    %cst_33 = arith.constant 5.000000e-01 : f32
    %75 = vector.broadcast %cst_33 : f32 to vector<8x128xf32>
    %76 = arith.mulf %75, %74 : vector<8x128xf32>
    %77 = math.tanh %76 : vector<8x128xf32>
    %cst_34 = arith.constant 5.000000e-01 : f32
    %78 = vector.broadcast %cst_34 : f32 to vector<8x128xf32>
    %79 = arith.mulf %78, %77 : vector<8x128xf32>
    %cst_35 = arith.constant 5.000000e-01 : f32
    %80 = vector.broadcast %cst_35 : f32 to vector<8x128xf32>
    %81 = arith.addf %79, %80 : vector<8x128xf32>
    %82 = arith.mulf %71, %45 : vector<8x128xf32>
    %83 = arith.mulf %63, %73 : vector<8x128xf32>
    %84 = arith.addf %82, %83 : vector<8x128xf32>
    %85 = math.tanh %84 : vector<8x128xf32>
    %86 = arith.mulf %81, %85 : vector<8x128xf32>
    %87 = arith.truncf %86 : vector<8x128xf32> to vector<8x128xbf16>
    %c0_36 = arith.constant 0 : index
    %c8 = arith.constant 8 : index
    %c0_37 = arith.constant 0 : index
    %88 = vector.load %arg6[%c0_36, %c8, %c0_37] : memref<1x64x128xbf16, #tpu.memory_space<vmem>>, vector<1x8x128xbf16>
    %89 = vector.shape_cast %88 : vector<1x8x128xbf16> to vector<8x128xbf16>
    %90 = vector.shape_cast %87 : vector<8x128xbf16> to vector<1x8x128xbf16>
    tpu.vector_store %arg6[%c0_36, %c8, %c0_37], %90 {strides = array<i32>} : memref<1x64x128xbf16, #tpu.memory_space<vmem>>, vector<1x8x128xbf16>,
    %91 = vector.extract_strided_slice %9 {offsets = [16, 0], sizes = [8, 512], strides = [1, 1]} : vector<64x512xf32> to vector<8x512xf32>
    %92 = arith.truncf %86 : vector<8x128xf32> to vector<8x128xbf16>
    %cst_38 = arith.constant dense<0.000000e+00> : vector<8x512xf32>
    %93 = tpu.matmul %92, %10, %cst_38 {dimension_numbers = #tpu.dot_dimension_numbers<[1], [0], [0], [1], [0, 0, 1, 1], [], []>} : vector<8x128xbf16>, vector<128x512xbf16>, vector<8x512xf32> -> vector<8x512xf32>
    %94 = arith.addf %91, %93 : vector<8x512xf32>
    %95 = vector.extract_strided_slice %94 {offsets = [0, 0], sizes = [8, 128], strides = [1, 1]} : vector<8x512xf32> to vector<8x128xf32>
    %cst_39 = arith.constant 5.000000e-01 : f32
    %96 = vector.broadcast %cst_39 : f32 to vector<8x128xf32>
    %97 = arith.mulf %96, %95 : vector<8x128xf32>
    %98 = math.tanh %97 : vector<8x128xf32>
    %cst_40 = arith.constant 5.000000e-01 : f32
    %99 = vector.broadcast %cst_40 : f32 to vector<8x128xf32>
    %100 = arith.mulf %99, %98 : vector<8x128xf32>
    %cst_41 = arith.constant 5.000000e-01 : f32
    %101 = vector.broadcast %cst_41 : f32 to vector<8x128xf32>
    %102 = arith.addf %100, %101 : vector<8x128xf32>
    %103 = vector.extract_strided_slice %94 {offsets = [0, 128], sizes = [8, 128], strides = [1, 1]} : vector<8x512xf32> to vector<8x128xf32>
    %cst_42 = arith.constant 5.000000e-01 : f32
    %104 = vector.broadcast %cst_42 : f32 to vector<8x128xf32>
    %105 = arith.mulf %104, %103 : vector<8x128xf32>
    %106 = math.tanh %105 : vector<8x128xf32>
    %cst_43 = arith.constant 5.000000e-01 : f32
    %107 = vector.broadcast %cst_43 : f32 to vector<8x128xf32>
    %108 = arith.mulf %107, %106 : vector<8x128xf32>
    %cst_44 = arith.constant 5.000000e-01 : f32
    %109 = vector.broadcast %cst_44 : f32 to vector<8x128xf32>
    %110 = arith.addf %108, %109 : vector<8x128xf32>
    %111 = vector.extract_strided_slice %94 {offsets = [0, 256], sizes = [8, 128], strides = [1, 1]} : vector<8x512xf32> to vector<8x128xf32>
    %112 = math.tanh %111 : vector<8x128xf32>
    %113 = vector.extract_strided_slice %94 {offsets = [0, 384], sizes = [8, 128], strides = [1, 1]} : vector<8x512xf32> to vector<8x128xf32>
    %cst_45 = arith.constant 5.000000e-01 : f32
    %114 = vector.broadcast %cst_45 : f32 to vector<8x128xf32>
    %115 = arith.mulf %114, %113 : vector<8x128xf32>
    %116 = math.tanh %115 : vector<8x128xf32>
    %cst_46 = arith.constant 5.000000e-01 : f32
    %117 = vector.broadcast %cst_46 : f32 to vector<8x128xf32>
    %118 = arith.mulf %117, %116 : vector<8x128xf32>
    %cst_47 = arith.constant 5.000000e-01 : f32
    %119 = vector.broadcast %cst_47 : f32 to vector<8x128xf32>
    %120 = arith.addf %118, %119 : vector<8x128xf32>
    %121 = arith.mulf %110, %84 : vector<8x128xf32>
    %122 = arith.mulf %102, %112 : vector<8x128xf32>
    %123 = arith.addf %121, %122 : vector<8x128xf32>
    %124 = math.tanh %123 : vector<8x128xf32>
    %125 = arith.mulf %120, %124 : vector<8x128xf32>
    %126 = arith.truncf %125 : vector<8x128xf32> to vector<8x128xbf16>
    %c0_48 = arith.constant 0 : index
    %c16 = arith.constant 16 : index
    %c0_49 = arith.constant 0 : index
    %127 = vector.load %arg6[%c0_48, %c16, %c0_49] : memref<1x64x128xbf16, #tpu.memory_space<vmem>>, vector<1x8x128xbf16>
    %128 = vector.shape_cast %127 : vector<1x8x128xbf16> to vector<8x128xbf16>
    %129 = vector.shape_cast %126 : vector<8x128xbf16> to vector<1x8x128xbf16>
    tpu.vector_store %arg6[%c0_48, %c16, %c0_49], %129 {strides = array<i32>} : memref<1x64x128xbf16, #tpu.memory_space<vmem>>, vector<1x8x128xbf16>,
    %130 = vector.extract_strided_slice %9 {offsets = [24, 0], sizes = [8, 512], strides = [1, 1]} : vector<64x512xf32> to vector<8x512xf32>
    %131 = arith.truncf %125 : vector<8x128xf32> to vector<8x128xbf16>
    %cst_50 = arith.constant dense<0.000000e+00> : vector<8x512xf32>
    %132 = tpu.matmul %131, %10, %cst_50 {dimension_numbers = #tpu.dot_dimension_numbers<[1], [0], [0], [1], [0, 0, 1, 1], [], []>} : vector<8x128xbf16>, vector<128x512xbf16>, vector<8x512xf32> -> vector<8x512xf32>
    %133 = arith.addf %130, %132 : vector<8x512xf32>
    %134 = vector.extract_strided_slice %133 {offsets = [0, 0], sizes = [8, 128], strides = [1, 1]} : vector<8x512xf32> to vector<8x128xf32>
    %cst_51 = arith.constant 5.000000e-01 : f32
    %135 = vector.broadcast %cst_51 : f32 to vector<8x128xf32>
    %136 = arith.mulf %135, %134 : vector<8x128xf32>
    %137 = math.tanh %136 : vector<8x128xf32>
    %cst_52 = arith.constant 5.000000e-01 : f32
    %138 = vector.broadcast %cst_52 : f32 to vector<8x128xf32>
    %139 = arith.mulf %138, %137 : vector<8x128xf32>
    %cst_53 = arith.constant 5.000000e-01 : f32
    %140 = vector.broadcast %cst_53 : f32 to vector<8x128xf32>
    %141 = arith.addf %139, %140 : vector<8x128xf32>
    %142 = vector.extract_strided_slice %133 {offsets = [0, 128], sizes = [8, 128], strides = [1, 1]} : vector<8x512xf32> to vector<8x128xf32>
    %cst_54 = arith.constant 5.000000e-01 : f32
    %143 = vector.broadcast %cst_54 : f32 to vector<8x128xf32>
    %144 = arith.mulf %143, %142 : vector<8x128xf32>
    %145 = math.tanh %144 : vector<8x128xf32>
    %cst_55 = arith.constant 5.000000e-01 : f32
    %146 = vector.broadcast %cst_55 : f32 to vector<8x128xf32>
    %147 = arith.mulf %146, %145 : vector<8x128xf32>
    %cst_56 = arith.constant 5.000000e-01 : f32
    %148 = vector.broadcast %cst_56 : f32 to vector<8x128xf32>
    %149 = arith.addf %147, %148 : vector<8x128xf32>
    %150 = vector.extract_strided_slice %133 {offsets = [0, 256], sizes = [8, 128], strides = [1, 1]} : vector<8x512xf32> to vector<8x128xf32>
    %151 = math.tanh %150 : vector<8x128xf32>
    %152 = vector.extract_strided_slice %133 {offsets = [0, 384], sizes = [8, 128], strides = [1, 1]} : vector<8x512xf32> to vector<8x128xf32>
    %cst_57 = arith.constant 5.000000e-01 : f32
    %153 = vector.broadcast %cst_57 : f32 to vector<8x128xf32>
    %154 = arith.mulf %153, %152 : vector<8x128xf32>
    %155 = math.tanh %154 : vector<8x128xf32>
    %cst_58 = arith.constant 5.000000e-01 : f32
    %156 = vector.broadcast %cst_58 : f32 to vector<8x128xf32>
    %157 = arith.mulf %156, %155 : vector<8x128xf32>
    %cst_59 = arith.constant 5.000000e-01 : f32
    %158 = vector.broadcast %cst_59 : f32 to vector<8x128xf32>
    %159 = arith.addf %157, %158 : vector<8x128xf32>
    %160 = arith.mulf %149, %123 : vector<8x128xf32>
    %161 = arith.mulf %141, %151 : vector<8x128xf32>
    %162 = arith.addf %160, %161 : vector<8x128xf32>
    %163 = math.tanh %162 : vector<8x128xf32>
    %164 = arith.mulf %159, %163 : vector<8x128xf32>
    %165 = arith.truncf %164 : vector<8x128xf32> to vector<8x128xbf16>
    %c0_60 = arith.constant 0 : index
    %c24 = arith.constant 24 : index
    %c0_61 = arith.constant 0 : index
    %166 = vector.load %arg6[%c0_60, %c24, %c0_61] : memref<1x64x128xbf16, #tpu.memory_space<vmem>>, vector<1x8x128xbf16>
    %167 = vector.shape_cast %166 : vector<1x8x128xbf16> to vector<8x128xbf16>
    %168 = vector.shape_cast %165 : vector<8x128xbf16> to vector<1x8x128xbf16>
    tpu.vector_store %arg6[%c0_60, %c24, %c0_61], %168 {strides = array<i32>} : memref<1x64x128xbf16, #tpu.memory_space<vmem>>, vector<1x8x128xbf16>,
    %169 = vector.extract_strided_slice %9 {offsets = [32, 0], sizes = [8, 512], strides = [1, 1]} : vector<64x512xf32> to vector<8x512xf32>
    %170 = arith.truncf %164 : vector<8x128xf32> to vector<8x128xbf16>
    %cst_62 = arith.constant dense<0.000000e+00> : vector<8x512xf32>
    %171 = tpu.matmul %170, %10, %cst_62 {dimension_numbers = #tpu.dot_dimension_numbers<[1], [0], [0], [1], [0, 0, 1, 1], [], []>} : vector<8x128xbf16>, vector<128x512xbf16>, vector<8x512xf32> -> vector<8x512xf32>
    %172 = arith.addf %169, %171 : vector<8x512xf32>
    %173 = vector.extract_strided_slice %172 {offsets = [0, 0], sizes = [8, 128], strides = [1, 1]} : vector<8x512xf32> to vector<8x128xf32>
    %cst_63 = arith.constant 5.000000e-01 : f32
    %174 = vector.broadcast %cst_63 : f32 to vector<8x128xf32>
    %175 = arith.mulf %174, %173 : vector<8x128xf32>
    %176 = math.tanh %175 : vector<8x128xf32>
    %cst_64 = arith.constant 5.000000e-01 : f32
    %177 = vector.broadcast %cst_64 : f32 to vector<8x128xf32>
    %178 = arith.mulf %177, %176 : vector<8x128xf32>
    %cst_65 = arith.constant 5.000000e-01 : f32
    %179 = vector.broadcast %cst_65 : f32 to vector<8x128xf32>
    %180 = arith.addf %178, %179 : vector<8x128xf32>
    %181 = vector.extract_strided_slice %172 {offsets = [0, 128], sizes = [8, 128], strides = [1, 1]} : vector<8x512xf32> to vector<8x128xf32>
    %cst_66 = arith.constant 5.000000e-01 : f32
    %182 = vector.broadcast %cst_66 : f32 to vector<8x128xf32>
    %183 = arith.mulf %182, %181 : vector<8x128xf32>
    %184 = math.tanh %183 : vector<8x128xf32>
    %cst_67 = arith.constant 5.000000e-01 : f32
    %185 = vector.broadcast %cst_67 : f32 to vector<8x128xf32>
    %186 = arith.mulf %185, %184 : vector<8x128xf32>
    %cst_68 = arith.constant 5.000000e-01 : f32
    %187 = vector.broadcast %cst_68 : f32 to vector<8x128xf32>
    %188 = arith.addf %186, %187 : vector<8x128xf32>
    %189 = vector.extract_strided_slice %172 {offsets = [0, 256], sizes = [8, 128], strides = [1, 1]} : vector<8x512xf32> to vector<8x128xf32>
    %190 = math.tanh %189 : vector<8x128xf32>
    %191 = vector.extract_strided_slice %172 {offsets = [0, 384], sizes = [8, 128], strides = [1, 1]} : vector<8x512xf32> to vector<8x128xf32>
    %cst_69 = arith.constant 5.000000e-01 : f32
    %192 = vector.broadcast %cst_69 : f32 to vector<8x128xf32>
    %193 = arith.mulf %192, %191 : vector<8x128xf32>
    %194 = math.tanh %193 : vector<8x128xf32>
    %cst_70 = arith.constant 5.000000e-01 : f32
    %195 = vector.broadcast %cst_70 : f32 to vector<8x128xf32>
    %196 = arith.mulf %195, %194 : vector<8x128xf32>
    %cst_71 = arith.constant 5.000000e-01 : f32
    %197 = vector.broadcast %cst_71 : f32 to vector<8x128xf32>
    %198 = arith.addf %196, %197 : vector<8x128xf32>
    %199 = arith.mulf %188, %162 : vector<8x128xf32>
    %200 = arith.mulf %180, %190 : vector<8x128xf32>
    %201 = arith.addf %199, %200 : vector<8x128xf32>
    %202 = math.tanh %201 : vector<8x128xf32>
    %203 = arith.mulf %198, %202 : vector<8x128xf32>
    %204 = arith.truncf %203 : vector<8x128xf32> to vector<8x128xbf16>
    %c0_72 = arith.constant 0 : index
    %c32 = arith.constant 32 : index
    %c0_73 = arith.constant 0 : index
    %205 = vector.load %arg6[%c0_72, %c32, %c0_73] : memref<1x64x128xbf16, #tpu.memory_space<vmem>>, vector<1x8x128xbf16>
    %206 = vector.shape_cast %205 : vector<1x8x128xbf16> to vector<8x128xbf16>
    %207 = vector.shape_cast %204 : vector<8x128xbf16> to vector<1x8x128xbf16>
    tpu.vector_store %arg6[%c0_72, %c32, %c0_73], %207 {strides = array<i32>} : memref<1x64x128xbf16, #tpu.memory_space<vmem>>, vector<1x8x128xbf16>,
    %208 = vector.extract_strided_slice %9 {offsets = [40, 0], sizes = [8, 512], strides = [1, 1]} : vector<64x512xf32> to vector<8x512xf32>
    %209 = arith.truncf %203 : vector<8x128xf32> to vector<8x128xbf16>
    %cst_74 = arith.constant dense<0.000000e+00> : vector<8x512xf32>
    %210 = tpu.matmul %209, %10, %cst_74 {dimension_numbers = #tpu.dot_dimension_numbers<[1], [0], [0], [1], [0, 0, 1, 1], [], []>} : vector<8x128xbf16>, vector<128x512xbf16>, vector<8x512xf32> -> vector<8x512xf32>
    %211 = arith.addf %208, %210 : vector<8x512xf32>
    %212 = vector.extract_strided_slice %211 {offsets = [0, 0], sizes = [8, 128], strides = [1, 1]} : vector<8x512xf32> to vector<8x128xf32>
    %cst_75 = arith.constant 5.000000e-01 : f32
    %213 = vector.broadcast %cst_75 : f32 to vector<8x128xf32>
    %214 = arith.mulf %213, %212 : vector<8x128xf32>
    %215 = math.tanh %214 : vector<8x128xf32>
    %cst_76 = arith.constant 5.000000e-01 : f32
    %216 = vector.broadcast %cst_76 : f32 to vector<8x128xf32>
    %217 = arith.mulf %216, %215 : vector<8x128xf32>
    %cst_77 = arith.constant 5.000000e-01 : f32
    %218 = vector.broadcast %cst_77 : f32 to vector<8x128xf32>
    %219 = arith.addf %217, %218 : vector<8x128xf32>
    %220 = vector.extract_strided_slice %211 {offsets = [0, 128], sizes = [8, 128], strides = [1, 1]} : vector<8x512xf32> to vector<8x128xf32>
    %cst_78 = arith.constant 5.000000e-01 : f32
    %221 = vector.broadcast %cst_78 : f32 to vector<8x128xf32>
    %222 = arith.mulf %221, %220 : vector<8x128xf32>
    %223 = math.tanh %222 : vector<8x128xf32>
    %cst_79 = arith.constant 5.000000e-01 : f32
    %224 = vector.broadcast %cst_79 : f32 to vector<8x128xf32>
    %225 = arith.mulf %224, %223 : vector<8x128xf32>
    %cst_80 = arith.constant 5.000000e-01 : f32
    %226 = vector.broadcast %cst_80 : f32 to vector<8x128xf32>
    %227 = arith.addf %225, %226 : vector<8x128xf32>
    %228 = vector.extract_strided_slice %211 {offsets = [0, 256], sizes = [8, 128], strides = [1, 1]} : vector<8x512xf32> to vector<8x128xf32>
    %229 = math.tanh %228 : vector<8x128xf32>
    %230 = vector.extract_strided_slice %211 {offsets = [0, 384], sizes = [8, 128], strides = [1, 1]} : vector<8x512xf32> to vector<8x128xf32>
    %cst_81 = arith.constant 5.000000e-01 : f32
    %231 = vector.broadcast %cst_81 : f32 to vector<8x128xf32>
    %232 = arith.mulf %231, %230 : vector<8x128xf32>
    %233 = math.tanh %232 : vector<8x128xf32>
    %cst_82 = arith.constant 5.000000e-01 : f32
    %234 = vector.broadcast %cst_82 : f32 to vector<8x128xf32>
    %235 = arith.mulf %234, %233 : vector<8x128xf32>
    %cst_83 = arith.constant 5.000000e-01 : f32
    %236 = vector.broadcast %cst_83 : f32 to vector<8x128xf32>
    %237 = arith.addf %235, %236 : vector<8x128xf32>
    %238 = arith.mulf %227, %201 : vector<8x128xf32>
    %239 = arith.mulf %219, %229 : vector<8x128xf32>
    %240 = arith.addf %238, %239 : vector<8x128xf32>
    %241 = math.tanh %240 : vector<8x128xf32>
    %242 = arith.mulf %237, %241 : vector<8x128xf32>
    %243 = arith.truncf %242 : vector<8x128xf32> to vector<8x128xbf16>
    %c0_84 = arith.constant 0 : index
    %c40 = arith.constant 40 : index
    %c0_85 = arith.constant 0 : index
    %244 = vector.load %arg6[%c0_84, %c40, %c0_85] : memref<1x64x128xbf16, #tpu.memory_space<vmem>>, vector<1x8x128xbf16>
    %245 = vector.shape_cast %244 : vector<1x8x128xbf16> to vector<8x128xbf16>
    %246 = vector.shape_cast %243 : vector<8x128xbf16> to vector<1x8x128xbf16>
    tpu.vector_store %arg6[%c0_84, %c40, %c0_85], %246 {strides = array<i32>} : memref<1x64x128xbf16, #tpu.memory_space<vmem>>, vector<1x8x128xbf16>,
    %247 = vector.extract_strided_slice %9 {offsets = [48, 0], sizes = [8, 512], strides = [1, 1]} : vector<64x512xf32> to vector<8x512xf32>
    %248 = arith.truncf %242 : vector<8x128xf32> to vector<8x128xbf16>
    %cst_86 = arith.constant dense<0.000000e+00> : vector<8x512xf32>
    %249 = tpu.matmul %248, %10, %cst_86 {dimension_numbers = #tpu.dot_dimension_numbers<[1], [0], [0], [1], [0, 0, 1, 1], [], []>} : vector<8x128xbf16>, vector<128x512xbf16>, vector<8x512xf32> -> vector<8x512xf32>
    %250 = arith.addf %247, %249 : vector<8x512xf32>
    %251 = vector.extract_strided_slice %250 {offsets = [0, 0], sizes = [8, 128], strides = [1, 1]} : vector<8x512xf32> to vector<8x128xf32>
    %cst_87 = arith.constant 5.000000e-01 : f32
    %252 = vector.broadcast %cst_87 : f32 to vector<8x128xf32>
    %253 = arith.mulf %252, %251 : vector<8x128xf32>
    %254 = math.tanh %253 : vector<8x128xf32>
    %cst_88 = arith.constant 5.000000e-01 : f32
    %255 = vector.broadcast %cst_88 : f32 to vector<8x128xf32>
    %256 = arith.mulf %255, %254 : vector<8x128xf32>
    %cst_89 = arith.constant 5.000000e-01 : f32
    %257 = vector.broadcast %cst_89 : f32 to vector<8x128xf32>
    %258 = arith.addf %256, %257 : vector<8x128xf32>
    %259 = vector.extract_strided_slice %250 {offsets = [0, 128], sizes = [8, 128], strides = [1, 1]} : vector<8x512xf32> to vector<8x128xf32>
    %cst_90 = arith.constant 5.000000e-01 : f32
    %260 = vector.broadcast %cst_90 : f32 to vector<8x128xf32>
    %261 = arith.mulf %260, %259 : vector<8x128xf32>
    %262 = math.tanh %261 : vector<8x128xf32>
    %cst_91 = arith.constant 5.000000e-01 : f32
    %263 = vector.broadcast %cst_91 : f32 to vector<8x128xf32>
    %264 = arith.mulf %263, %262 : vector<8x128xf32>
    %cst_92 = arith.constant 5.000000e-01 : f32
    %265 = vector.broadcast %cst_92 : f32 to vector<8x128xf32>
    %266 = arith.addf %264, %265 : vector<8x128xf32>
    %267 = vector.extract_strided_slice %250 {offsets = [0, 256], sizes = [8, 128], strides = [1, 1]} : vector<8x512xf32> to vector<8x128xf32>
    %268 = math.tanh %267 : vector<8x128xf32>
    %269 = vector.extract_strided_slice %250 {offsets = [0, 384], sizes = [8, 128], strides = [1, 1]} : vector<8x512xf32> to vector<8x128xf32>
    %cst_93 = arith.constant 5.000000e-01 : f32
    %270 = vector.broadcast %cst_93 : f32 to vector<8x128xf32>
    %271 = arith.mulf %270, %269 : vector<8x128xf32>
    %272 = math.tanh %271 : vector<8x128xf32>
    %cst_94 = arith.constant 5.000000e-01 : f32
    %273 = vector.broadcast %cst_94 : f32 to vector<8x128xf32>
    %274 = arith.mulf %273, %272 : vector<8x128xf32>
    %cst_95 = arith.constant 5.000000e-01 : f32
    %275 = vector.broadcast %cst_95 : f32 to vector<8x128xf32>
    %276 = arith.addf %274, %275 : vector<8x128xf32>
    %277 = arith.mulf %266, %240 : vector<8x128xf32>
    %278 = arith.mulf %258, %268 : vector<8x128xf32>
    %279 = arith.addf %277, %278 : vector<8x128xf32>
    %280 = math.tanh %279 : vector<8x128xf32>
    %281 = arith.mulf %276, %280 : vector<8x128xf32>
    %282 = arith.truncf %281 : vector<8x128xf32> to vector<8x128xbf16>
    %c0_96 = arith.constant 0 : index
    %c48 = arith.constant 48 : index
    %c0_97 = arith.constant 0 : index
    %283 = vector.load %arg6[%c0_96, %c48, %c0_97] : memref<1x64x128xbf16, #tpu.memory_space<vmem>>, vector<1x8x128xbf16>
    %284 = vector.shape_cast %283 : vector<1x8x128xbf16> to vector<8x128xbf16>
    %285 = vector.shape_cast %282 : vector<8x128xbf16> to vector<1x8x128xbf16>
    tpu.vector_store %arg6[%c0_96, %c48, %c0_97], %285 {strides = array<i32>} : memref<1x64x128xbf16, #tpu.memory_space<vmem>>, vector<1x8x128xbf16>,
    %286 = vector.extract_strided_slice %9 {offsets = [56, 0], sizes = [8, 512], strides = [1, 1]} : vector<64x512xf32> to vector<8x512xf32>
    %287 = arith.truncf %281 : vector<8x128xf32> to vector<8x128xbf16>
    %cst_98 = arith.constant dense<0.000000e+00> : vector<8x512xf32>
    %288 = tpu.matmul %287, %10, %cst_98 {dimension_numbers = #tpu.dot_dimension_numbers<[1], [0], [0], [1], [0, 0, 1, 1], [], []>} : vector<8x128xbf16>, vector<128x512xbf16>, vector<8x512xf32> -> vector<8x512xf32>
    %289 = arith.addf %286, %288 : vector<8x512xf32>
    %290 = vector.extract_strided_slice %289 {offsets = [0, 0], sizes = [8, 128], strides = [1, 1]} : vector<8x512xf32> to vector<8x128xf32>
    %cst_99 = arith.constant 5.000000e-01 : f32
    %291 = vector.broadcast %cst_99 : f32 to vector<8x128xf32>
    %292 = arith.mulf %291, %290 : vector<8x128xf32>
    %293 = math.tanh %292 : vector<8x128xf32>
    %cst_100 = arith.constant 5.000000e-01 : f32
    %294 = vector.broadcast %cst_100 : f32 to vector<8x128xf32>
    %295 = arith.mulf %294, %293 : vector<8x128xf32>
    %cst_101 = arith.constant 5.000000e-01 : f32
    %296 = vector.broadcast %cst_101 : f32 to vector<8x128xf32>
    %297 = arith.addf %295, %296 : vector<8x128xf32>
    %298 = vector.extract_strided_slice %289 {offsets = [0, 128], sizes = [8, 128], strides = [1, 1]} : vector<8x512xf32> to vector<8x128xf32>
    %cst_102 = arith.constant 5.000000e-01 : f32
    %299 = vector.broadcast %cst_102 : f32 to vector<8x128xf32>
    %300 = arith.mulf %299, %298 : vector<8x128xf32>
    %301 = math.tanh %300 : vector<8x128xf32>
    %cst_103 = arith.constant 5.000000e-01 : f32
    %302 = vector.broadcast %cst_103 : f32 to vector<8x128xf32>
    %303 = arith.mulf %302, %301 : vector<8x128xf32>
    %cst_104 = arith.constant 5.000000e-01 : f32
    %304 = vector.broadcast %cst_104 : f32 to vector<8x128xf32>
    %305 = arith.addf %303, %304 : vector<8x128xf32>
    %306 = vector.extract_strided_slice %289 {offsets = [0, 256], sizes = [8, 128], strides = [1, 1]} : vector<8x512xf32> to vector<8x128xf32>
    %307 = math.tanh %306 : vector<8x128xf32>
    %308 = vector.extract_strided_slice %289 {offsets = [0, 384], sizes = [8, 128], strides = [1, 1]} : vector<8x512xf32> to vector<8x128xf32>
    %cst_105 = arith.constant 5.000000e-01 : f32
    %309 = vector.broadcast %cst_105 : f32 to vector<8x128xf32>
    %310 = arith.mulf %309, %308 : vector<8x128xf32>
    %311 = math.tanh %310 : vector<8x128xf32>
    %cst_106 = arith.constant 5.000000e-01 : f32
    %312 = vector.broadcast %cst_106 : f32 to vector<8x128xf32>
    %313 = arith.mulf %312, %311 : vector<8x128xf32>
    %cst_107 = arith.constant 5.000000e-01 : f32
    %314 = vector.broadcast %cst_107 : f32 to vector<8x128xf32>
    %315 = arith.addf %313, %314 : vector<8x128xf32>
    %316 = arith.mulf %305, %279 : vector<8x128xf32>
    %317 = arith.mulf %297, %307 : vector<8x128xf32>
    %318 = arith.addf %316, %317 : vector<8x128xf32>
    %319 = math.tanh %318 : vector<8x128xf32>
    %320 = arith.mulf %315, %319 : vector<8x128xf32>
    %321 = arith.truncf %320 : vector<8x128xf32> to vector<8x128xbf16>
    %c0_108 = arith.constant 0 : index
    %c56 = arith.constant 56 : index
    %c0_109 = arith.constant 0 : index
    %322 = vector.load %arg6[%c0_108, %c56, %c0_109] : memref<1x64x128xbf16, #tpu.memory_space<vmem>>, vector<1x8x128xbf16>
    %323 = vector.shape_cast %322 : vector<1x8x128xbf16> to vector<8x128xbf16>
    %324 = vector.shape_cast %321 : vector<8x128xbf16> to vector<1x8x128xbf16>
    tpu.vector_store %arg6[%c0_108, %c56, %c0_109], %324 {strides = array<i32>} : memref<1x64x128xbf16, #tpu.memory_space<vmem>>, vector<1x8x128xbf16>,
    %c0_110 = arith.constant 0 : index
    %c0_111 = arith.constant 0 : index
    %325 = vector.load %arg7[%c0_110, %c0_111] : memref<8x128xf32, #tpu.memory_space<vmem>>, vector<8x128xf32>
    tpu.vector_store %arg7[%c0_110, %c0_111], %320 {strides = array<i32>} : memref<8x128xf32, #tpu.memory_space<vmem>>, vector<8x128xf32>,
    %c0_112 = arith.constant 0 : index
    %c0_113 = arith.constant 0 : index
    %326 = vector.load %arg8[%c0_112, %c0_113] : memref<8x128xf32, #tpu.memory_space<vmem>>, vector<8x128xf32>
    tpu.vector_store %arg8[%c0_112, %c0_113], %318 {strides = array<i32>} : memref<8x128xf32, #tpu.memory_space<vmem>>, vector<8x128xf32>,
    return
  }
  func.func @transform_0(%arg0: i32, %arg1: i32) -> (i32, i32, i32) {
    %c0_i32 = arith.constant 0 : i32
    %c0_i32_0 = arith.constant 0 : i32
    return %arg0, %arg1, %c0_i32 : i32, i32, i32
  }
  func.func @transform_1(%arg0: i32, %arg1: i32) -> (i32, i32) {
    %c0_i32 = arith.constant 0 : i32
    %c0_i32_0 = arith.constant 0 : i32
    %c0_i32_1 = arith.constant 0 : i32
    return %c0_i32, %c0_i32_0 : i32, i32
  }
  func.func @transform_2(%arg0: i32, %arg1: i32) -> (i32, i32) {
    %c0_i32 = arith.constant 0 : i32
    %c0_i32_0 = arith.constant 0 : i32
    %c0_i32_1 = arith.constant 0 : i32
    return %c0_i32, %c0_i32_0 : i32, i32
  }
  func.func @transform_3(%arg0: i32, %arg1: i32) -> (i32, i32) {
    %c0_i32 = arith.constant 0 : i32
    %c0_i32_0 = arith.constant 0 : i32
    %c0_i32_1 = arith.constant 0 : i32
    return %c0_i32, %c0_i32_0 : i32, i32
  }
  func.func @transform_4(%arg0: i32, %arg1: i32) -> (i32, i32, i32) {
    %c0_i32 = arith.constant 0 : i32
    %c0_i32_0 = arith.constant 0 : i32
    return %arg0, %arg1, %c0_i32 : i32, i32, i32
  }
}

</mosaic_0001>

<llo_original>
// kernel: tpu_custom_call.1
$region0: #{tpu_custom_call.1}
  #allocation0 [shape = 'u32[]', space=smem, size = 0x4, offset = 0x4, fixed_abs, tag = 'smem constant byte address 0x4 - core index']
  #allocation1 [shape = 'u32[144,128]{1,0:T(1,128)}', space=vmem, size = 0x12000, scoped, tag = 'internal scratch']
  #allocation2 [shape = 'f32[8,128]{1,0:T(8,128)}', space=vmem, size = 0x1000, scoped, tag = 'scratch operand']
  #allocation3 [shape = 'f32[8,128]{1,0:T(8,128)}', space=vmem, size = 0x1000, scoped, tag = 'scratch operand']
  %s0 = inlined_call_operand.hbm [shape: bf16[1,64,128], index: 0, kind: input, shape index: {}]
  %s1 = inlined_call_operand.hbm [shape: bf16[128,512], index: 1, kind: input, shape index: {}]
  %s2 = inlined_call_operand.hbm [shape: bf16[128,512], index: 2, kind: input, shape index: {}]
  %s3 = inlined_call_operand.vmem [shape: f32[1,512], index: 3, kind: input, shape index: {}]
  %s4 = inlined_call_operand.hbm [shape: bf16[1,64,128], index: 4, kind: output, shape index: {}]
  %s5 = sld [smem:[#allocation0]]
  $region42: #{tpu_custom_call.1} parent=0
    _
  %s7 = ssub.s32 1, %s5
  %s8 = scalar_select 0, %s7, %s5
  $region1: #{tpu_custom_call.1} parent=0
    #allocation4 [shape = 'u8[16384]{0}', space=vmem, size = 0x4000, scoped, tag = 'input window, operand 0, single buffered']
    #allocation5 [shape = 's32[1]{0}', space=sflag, size = 0x4, scoped, tag = 'scoped memory for tpu_custom_call.1']
    #allocation6 [shape = 's32[1]{0}', space=sflag, size = 0x4, scoped, tag = 'scoped memory for tpu_custom_call.1']
    #allocation7 [shape = 'u8[131072]{0}', space=vmem, size = 0x20000, scoped, tag = 'input window, operand 1, single buffered']
    #allocation8 [shape = 's32[1]{0}', space=sflag, size = 0x4, scoped, tag = 'scoped memory for tpu_custom_call.1']
    #allocation9 [shape = 'u8[131072]{0}', space=vmem, size = 0x20000, scoped, tag = 'input window, operand 2, single buffered']
    #allocation10 [shape = 'u8[16384]{0}', space=vmem, size = 0x4000, scoped, tag = 'output window, operand 0, single buffered']
    %9 = vsyncpa [#allocation5], 0
    %10 = vsyncpa [#allocation8], 0
    %11 = vsyncpa [#allocation6], 0
    // Predicated region
    $region2: #{tpu_custom_call.1} parent=1 // pred_check
      _
    $region3: #{tpu_custom_call.1} parent=1 // pred_check_branch
      %13 = sbr.rel (0) target = $region5
    $region4: #{tpu_custom_call.1} parent=1 // pred_region
      %s15 = ssub.s32 512, 512
      %16 = vsyncadd [#allocation5], %s15
      %s17 = sshll.u32 [#allocation4], 4
      %s18 = int_to_ptr.vmem [resolvable:$true] %s17
      %23 = dma.hbm_to_vmem [thread:$0]  %s0, 512, %s18, [#allocation5], 64, 64, 4
    $region5: #{tpu_custom_call.1} parent=1 // pred_fallthru
      _
    // Predicated region
    $region6: #{tpu_custom_call.1} parent=1 // pred_check
      _
    $region7: #{tpu_custom_call.1} parent=1 // pred_check_branch
      %25 = sbr.rel (0) target = $region9
    $region8: #{tpu_custom_call.1} parent=1 // pred_region
      %s27 = ssub.s32 4096, 4096
      %28 = vsyncadd [#allocation8], %s27
      %s29 = sshll.u32 [#allocation7], 4
      %s30 = int_to_ptr.vmem [resolvable:$true] %s29
      %35 = dma.hbm_to_vmem [thread:$0]  %s1, 4096, %s30, [#allocation8], 256, 256, 16
    $region9: #{tpu_custom_call.1} parent=1 // pred_fallthru
      _
    // Predicated region
    $region10: #{tpu_custom_call.1} parent=1 // pred_check
      _
    $region11: #{tpu_custom_call.1} parent=1 // pred_check_branch
      %37 = sbr.rel (0) target = $region13
    $region12: #{tpu_custom_call.1} parent=1 // pred_region
      %s39 = ssub.s32 4096, 4096
      %40 = vsyncadd [#allocation8], %s39
      %s41 = sshll.u32 [#allocation9], 4
      %s42 = int_to_ptr.vmem [resolvable:$true] %s41
      %47 = dma.hbm_to_vmem [thread:$0]  %s2, 4096, %s42, [#allocation8], 256, 256, 16
    $region13: #{tpu_custom_call.1} parent=1 // pred_fallthru
      _
    // Predicated region
    $region14: #{tpu_custom_call.1} parent=1 // pred_check
      _
    $region15: #{tpu_custom_call.1} parent=1 // pred_check_branch
      %49 = sbr.rel (0) target = $region17
    $region16: #{tpu_custom_call.1} parent=1 // pred_region
      _
    $region17: #{tpu_custom_call.1} parent=1 // pred_fallthru
      _
    // Predicated region
    $region18: #{tpu_custom_call.1} parent=1 // pred_check
      _
    $region19: #{tpu_custom_call.1} parent=1 // pred_check_branch
      %51 = sbr.rel (0) target = $region21
    $region20: #{tpu_custom_call.1} parent=1 // pred_region
      %52 = dma.done [#allocation5], 512
    $region21: #{tpu_custom_call.1} parent=1 // pred_fallthru
      _
    // Predicated region
    $region22: #{tpu_custom_call.1} parent=1 // pred_check
      _
    $region23: #{tpu_custom_call.1} parent=1 // pred_check_branch
      %54 = sbr.rel (0) target = $region25
    $region24: #{tpu_custom_call.1} parent=1 // pred_region
      %55 = dma.done [#allocation8], 4096
    $region25: #{tpu_custom_call.1} parent=1 // pred_fallthru
      _
    // Predicated region
    $region26: #{tpu_custom_call.1} parent=1 // pred_check
      _
    $region27: #{tpu_custom_call.1} parent=1 // pred_check_branch
      %57 = sbr.rel (0) target = $region29
    $region28: #{tpu_custom_call.1} parent=1 // pred_region
      %58 = dma.done [#allocation8], 4096
    $region29: #{tpu_custom_call.1} parent=1 // pred_fallthru
      _
    %p60 = scmp.eq.s32.totalorder 0, 0
    // Predicated region
    $region30: #{tpu_custom_call.1} parent=1 // pred_check
      %p61 = pneg %p60
    $region31: #{tpu_custom_call.1} parent=1 // pred_check_branch
      %63 = sbr.rel (%p61) target = $region33
    $region32: #{tpu_custom_call.1} parent=1 // pred_region
      %64 = vst [vmem:[#allocation2] sm:$0xff] 0.0
      %65 = vst [vmem:[#allocation3] sm:$0xff] 0.0
    $region33: #{tpu_custom_call.1} parent=1 // pred_fallthru
      _
    %v66 = vld [vmem:[#allocation4] sm:$0xf]
    %v67 = vld [vmem:[#allocation4 + $0x4] sm:$0xf]
    %v68 = vld [vmem:[#allocation4 + $0x8] sm:$0xf]
    %v69 = vld [vmem:[#allocation4 + $0xc] sm:$0xf]
    %v70 = vld [vmem:[#allocation4 + $0x10] sm:$0xf]
    %v71 = vld [vmem:[#allocation4 + $0x14] sm:$0xf]
    %v72 = vld [vmem:[#allocation4 + $0x18] sm:$0xf]
    %v73 = vld [vmem:[#allocation4 + $0x1c] sm:$0xf]
    %v74 = vld [vmem:[#allocation7] sm:$0xff]
    %v75 = vld [vmem:[#allocation7 + $0x8] sm:$0xff]
    %v76 = vld [vmem:[#allocation7 + $0x10] sm:$0xff]
    %v77 = vld [vmem:[#allocation7 + $0x18] sm:$0xff]
    %v78 = vld [vmem:[#allocation7 + $0x20] sm:$0xff]
    %v79 = vld [vmem:[#allocation7 + $0x28] sm:$0xff]
    %v80 = vld [vmem:[#allocation7 + $0x30] sm:$0xff]
    %v81 = vld [vmem:[#allocation7 + $0x38] sm:$0xff]
    %v82 = vld [vmem:[#allocation7 + $0x40] sm:$0xff]
    %v83 = vld [vmem:[#allocation7 + $0x48] sm:$0xff]
    %v84 = vld [vmem:[#allocation7 + $0x50] sm:$0xff]
    %v85 = vld [vmem:[#allocation7 + $0x58] sm:$0xff]
    %v86 = vld [vmem:[#allocation7 + $0x60] sm:$0xff]
    %v87 = vld [vmem:[#allocation7 + $0x68] sm:$0xff]
    %v88 = vld [vmem:[#allocation7 + $0x70] sm:$0xff]
    %v89 = vld [vmem:[#allocation7 + $0x78] sm:$0xff]
    %v90 = vld [vmem:[#allocation7 + $0x80] sm:$0xff]
    %v91 = vld [vmem:[#allocation7 + $0x88] sm:$0xff]
    %v92 = vld [vmem:[#allocation7 + $0x90] sm:$0xff]
    %v93 = vld [vmem:[#allocation7 + $0x98] sm:$0xff]
    %v94 = vld [vmem:[#allocation7 + $0xa0] sm:$0xff]
    %v95 = vld [vmem:[#allocation7 + $0xa8] sm:$0xff]
    %v96 = vld [vmem:[#allocation7 + $0xb0] sm:$0xff]
    %v97 = vld [vmem:[#allocation7 + $0xb8] sm:$0xff]
    %v98 = vld [vmem:[#allocation7 + $0xc0] sm:$0xff]
    %v99 = vld [vmem:[#allocation7 + $0xc8] sm:$0xff]
    %v100 = vld [vmem:[#allocation7 + $0xd0] sm:$0xff]
    %v101 = vld [vmem:[#allocation7 + $0xd8] sm:$0xff]
    %v102 = vld [vmem:[#allocation7 + $0xe0] sm:$0xff]
    %v103 = vld [vmem:[#allocation7 + $0xe8] sm:$0xff]
    %v104 = vld [vmem:[#allocation7 + $0xf0] sm:$0xff]
    %v105 = vld [vmem:[#allocation7 + $0xf8] sm:$0xff]
    %v106 = vld [vmem:[%s3] sm:$0xf]
    %v108 = vlaneseq
    %v109 = vshrl.u32 %v108, 7
    %v110 = vsub.s32 0, %v109
    %v111 = vrot.slane %v106, %v110
    %v112 = vlaneseq
    %v113 = vshrl.u32 %v112, 7
    %v114 = vsub.s32 1, %v113
    %v115 = vrot.slane %v106, %v114
    %v116 = vlaneseq
    %v117 = vshrl.u32 %v116, 7
    %v118 = vsub.s32 2, %v117
    %v119 = vrot.slane %v106, %v118
    %v120 = vlaneseq
    %v121 = vshrl.u32 %v120, 7
    %v122 = vsub.s32 3, %v121
    %v123 = vrot.slane %v106, %v122
    %v136 = vunpack.c.l.b16 %v66
    %v137 = vunpack.c.l.b16 %v67
    %v138 = vunpack.c.l.b16 %v68
    %v139 = vunpack.c.l.b16 %v69
    %v140 = vunpack.c.l.b16 %v70
    %v141 = vunpack.c.l.b16 %v71
    %v142 = vunpack.c.l.b16 %v72
    %v143 = vunpack.c.l.b16 %v73
    %v144 = vpack.c.b16 %v137, %v136
    %v145 = vpack.c.b16 %v139, %v138
    %v146 = vpack.c.b16 %v141, %v140
    %v147 = vpack.c.b16 %v143, %v142
    %v184 = vunpack.c.l.b16 %v74
    %v185 = vunpack.c.h.b16 %v74
    %v186 = vunpack.c.l.b16 %v75
    %v187 = vunpack.c.h.b16 %v75
    %v188 = vunpack.c.l.b16 %v76
    %v189 = vunpack.c.h.b16 %v76
    %v190 = vunpack.c.l.b16 %v77
    %v191 = vunpack.c.h.b16 %v77
    %v192 = vunpack.c.l.b16 %v78
    %v193 = vunpack.c.h.b16 %v78
    %v194 = vunpack.c.l.b16 %v79
    %v195 = vunpack.c.h.b16 %v79
    %v196 = vunpack.c.l.b16 %v80
    %v197 = vunpack.c.h.b16 %v80
    %v198 = vunpack.c.l.b16 %v81
    %v199 = vunpack.c.h.b16 %v81
    %v200 = vunpack.c.l.b16 %v82
    %v201 = vunpack.c.h.b16 %v82
    %v202 = vunpack.c.l.b16 %v83
    %v203 = vunpack.c.h.b16 %v83
    %v204 = vunpack.c.l.b16 %v84
    %v205 = vunpack.c.h.b16 %v84
    %v206 = vunpack.c.l.b16 %v85
    %v207 = vunpack.c.h.b16 %v85
    %v208 = vunpack.c.l.b16 %v86
    %v209 = vunpack.c.h.b16 %v86
    %v210 = vunpack.c.l.b16 %v87
    %v211 = vunpack.c.h.b16 %v87
    %v212 = vunpack.c.l.b16 %v88
    %v213 = vunpack.c.h.b16 %v88
    %v214 = vunpack.c.l.b16 %v89
    %v215 = vunpack.c.h.b16 %v89
    %v216 = vunpack.c.l.b16 %v90
    %v217 = vunpack.c.h.b16 %v90
    %v218 = vunpack.c.l.b16 %v91
    %v219 = vunpack.c.h.b16 %v91
    %v220 = vunpack.c.l.b16 %v92
    %v221 = vunpack.c.h.b16 %v92
    %v222 = vunpack.c.l.b16 %v93
    %v223 = vunpack.c.h.b16 %v93
    %v224 = vunpack.c.l.b16 %v94
    %v225 = vunpack.c.h.b16 %v94
    %v226 = vunpack.c.l.b16 %v95
    %v227 = vunpack.c.h.b16 %v95
    %v228 = vunpack.c.l.b16 %v96
    %v229 = vunpack.c.h.b16 %v96
    %v230 = vunpack.c.l.b16 %v97
    %v231 = vunpack.c.h.b16 %v97
    %v232 = vunpack.c.l.b16 %v98
    %v233 = vunpack.c.h.b16 %v98
    %v234 = vunpack.c.l.b16 %v99
    %v235 = vunpack.c.h.b16 %v99
    %v236 = vunpack.c.l.b16 %v100
    %v237 = vunpack.c.h.b16 %v100
    %v238 = vunpack.c.l.b16 %v101
    %v239 = vunpack.c.h.b16 %v101
    %v240 = vunpack.c.l.b16 %v102
    %v241 = vunpack.c.h.b16 %v102
    %v242 = vunpack.c.l.b16 %v103
    %v243 = vunpack.c.h.b16 %v103
    %v244 = vunpack.c.l.b16 %v104
    %v245 = vunpack.c.h.b16 %v104
    %v246 = vunpack.c.l.b16 %v105
    %v247 = vunpack.c.h.b16 %v105
    %v248 = vpack.c.b16 %v188, %v184
    %v249 = vpack.c.b16 %v189, %v185
    %v250 = vpack.c.b16 %v190, %v186
    %v251 = vpack.c.b16 %v191, %v187
    %v252 = vpack.c.b16 %v196, %v192
    %v253 = vpack.c.b16 %v197, %v193
    %v254 = vpack.c.b16 %v198, %v194
    %v255 = vpack.c.b16 %v199, %v195
    %v256 = vpack.c.b16 %v204, %v200
    %v257 = vpack.c.b16 %v205, %v201
    %v258 = vpack.c.b16 %v206, %v202
    %v259 = vpack.c.b16 %v207, %v203
    %v260 = vpack.c.b16 %v212, %v208
    %v261 = vpack.c.b16 %v213, %v209
    %v262 = vpack.c.b16 %v214, %v210
    %v263 = vpack.c.b16 %v215, %v211
    %v264 = vpack.c.b16 %v220, %v216
    %v265 = vpack.c.b16 %v221, %v217
    %v266 = vpack.c.b16 %v222, %v218
    %v267 = vpack.c.b16 %v223, %v219
    %v268 = vpack.c.b16 %v228, %v224
    %v269 = vpack.c.b16 %v229, %v225
    %v270 = vpack.c.b16 %v230, %v226
    %v271 = vpack.c.b16 %v231, %v227
    %v272 = vpack.c.b16 %v236, %v232
    %v273 = vpack.c.b16 %v237, %v233
    %v274 = vpack.c.b16 %v238, %v234
    %v275 = vpack.c.b16 %v239, %v235
    %v276 = vpack.c.b16 %v244, %v240
    %v277 = vpack.c.b16 %v245, %v241
    %v278 = vpack.c.b16 %v246, %v242
    %v279 = vpack.c.b16 %v247, %v243
    %312 = vmatprep.subr.bf16.mxu0 %v249
    %313 = vmatpush1.bf16.msra.mxu0 %v248
    %314 = vmatprep.subr.bf16.mxu0 %v253
    %315 = vmatpush1.bf16.msra.mxu0 %v252
    %316 = vmatprep.subr.bf16.mxu0 %v257
    %317 = vmatpush1.bf16.msra.mxu0 %v256
    %318 = vmatprep.subr.bf16.mxu0 %v261
    %319 = vmatpush1.bf16.msra.mxu0 %v260
    %320 = vmatprep.subr.bf16.mxu0 %v265
    %321 = vmatpush1.bf16.msra.mxu0 %v264
    %322 = vmatprep.subr.bf16.mxu0 %v269
    %323 = vmatpush1.bf16.msra.mxu0 %v268
    %324 = vmatprep.subr.bf16.mxu0 %v273
    %325 = vmatpush1.bf16.msra.mxu0 %v272
    %326 = vmatprep.subr.bf16.mxu0 %v277
    %327 = vmatpush1.bf16.msra.mxu0 %v276
    %328 = vmatprep.subr.bf16.mxu0 0
    %329 = vmatpush1.bf16.msra.mxu0 0
    %330 = vmatprep.subr.bf16.mxu0 0
    %331 = vmatpush1.bf16.msra.mxu0 0
    %332 = vmatprep.subr.bf16.mxu0 0
    %333 = vmatpush1.bf16.msra.mxu0 0
    %334 = vmatprep.subr.bf16.mxu0 0
    %335 = vmatpush1.bf16.msra.mxu0 0
    %336 = vmatprep.subr.bf16.mxu0 0
    %337 = vmatpush1.bf16.msra.mxu0 0
    %338 = vmatprep.subr.bf16.mxu0 0
    %339 = vmatpush1.bf16.msra.mxu0 0
    %340 = vmatprep.subr.bf16.mxu0 0
    %341 = vmatpush1.bf16.msra.mxu0 0
    %342 = vmatprep.subr.bf16.mxu0 0
    %343 = vmatpush1.bf16.msra.mxu0 0
    %344 = vmatprep.mubr.bf16.mxu0 0
    %345 = vmatmul.mubr.bf16.gmra.mrb[0].mxu0 %v144
    %v346 = vpop.f32.mrb[0].mxu0
    %v347 = vadd.f32 %v111, %v346
    %v348 = vpop.f32.mrb[0].mxu0
    %v349 = vadd.f32 %v115, %v348
    %v350 = vpop.f32.mrb[0].mxu0
    %v351 = vadd.f32 %v111, %v350
    %v352 = vpop.f32.mrb[0].mxu0
    %v353 = vadd.f32 %v115, %v352
    %354 = vmatprep.mubr.bf16.mxu0 0
    %355 = vmatmul.mubr.bf16.gmra.mrb[0].mxu0 %v145
    %v356 = vpop.f32.mrb[0].mxu0
    %v357 = vadd.f32 %v111, %v356
    %v358 = vpop.f32.mrb[0].mxu0
    %v359 = vadd.f32 %v115, %v358
    %v360 = vpop.f32.mrb[0].mxu0
    %v361 = vadd.f32 %v111, %v360
    %v362 = vpop.f32.mrb[0].mxu0
    %v363 = vadd.f32 %v115, %v362
    %364 = vmatprep.mubr.bf16.mxu0 0
    %365 = vmatmul.mubr.bf16.gmra.mrb[0].mxu0 %v146
    %v366 = vpop.f32.mrb[0].mxu0
    %v367 = vadd.f32 %v111, %v366
    %v368 = vpop.f32.mrb[0].mxu0
    %v369 = vadd.f32 %v115, %v368
    %v370 = vpop.f32.mrb[0].mxu0
    %v371 = vadd.f32 %v111, %v370
    %v372 = vpop.f32.mrb[0].mxu0
    %v373 = vadd.f32 %v115, %v372
    %374 = vmatprep.mubr.bf16.mxu0 0
    %375 = vmatmul.mubr.bf16.gmra.mrb[0].mxu0 %v147
    %v376 = vpop.f32.mrb[0].mxu0
    %v377 = vadd.f32 %v111, %v376
    %v378 = vpop.f32.mrb[0].mxu0
    %v379 = vadd.f32 %v115, %v378
    %v380 = vpop.f32.mrb[0].mxu0
    %v381 = vadd.f32 %v111, %v380
    %v382 = vpop.f32.mrb[0].mxu0
    %v383 = vadd.f32 %v115, %v382
    %384 = vdwg.mxu0
    %385 = vmatprep.subr.bf16.mxu0 %v251
    %386 = vmatpush1.bf16.msra.mxu0 %v250
    %387 = vmatprep.subr.bf16.mxu0 %v255
    %388 = vmatpush1.bf16.msra.mxu0 %v254
    %389 = vmatprep.subr.bf16.mxu0 %v259
    %390 = vmatpush1.bf16.msra.mxu0 %v258
    %391 = vmatprep.subr.bf16.mxu0 %v263
    %392 = vmatpush1.bf16.msra.mxu0 %v262
    %393 = vmatprep.subr.bf16.mxu0 %v267
    %394 = vmatpush1.bf16.msra.mxu0 %v266
    %395 = vmatprep.subr.bf16.mxu0 %v271
    %396 = vmatpush1.bf16.msra.mxu0 %v270
    %397 = vmatprep.subr.bf16.mxu0 %v275
    %398 = vmatpush1.bf16.msra.mxu0 %v274
    %399 = vmatprep.subr.bf16.mxu0 %v279
    %400 = vmatpush1.bf16.msra.mxu0 %v278
    %401 = vmatprep.subr.bf16.mxu0 0
    %402 = vmatpush1.bf16.msra.mxu0 0
    %403 = vmatprep.subr.bf16.mxu0 0
    %404 = vmatpush1.bf16.msra.mxu0 0
    %405 = vmatprep.subr.bf16.mxu0 0
    %406 = vmatpush1.bf16.msra.mxu0 0
    %407 = vmatprep.subr.bf16.mxu0 0
    %408 = vmatpush1.bf16.msra.mxu0 0
    %409 = vmatprep.subr.bf16.mxu0 0
    %410 = vmatpush1.bf16.msra.mxu0 0
    %411 = vmatprep.subr.bf16.mxu0 0
    %412 = vmatpush1.bf16.msra.mxu0 0
    %413 = vmatprep.subr.bf16.mxu0 0
    %414 = vmatpush1.bf16.msra.mxu0 0
    %415 = vmatprep.subr.bf16.mxu0 0
    %416 = vmatpush1.bf16.msra.mxu0 0
    %417 = vmatprep.mubr.bf16.mxu0 0
    %418 = vmatmul.mubr.bf16.gmra.mrb[0].mxu0 %v144
    %v419 = vpop.f32.mrb[0].mxu0
    %v420 = vadd.f32 %v119, %v419
    %v421 = vpop.f32.mrb[0].mxu0
    %v422 = vadd.f32 %v123, %v421
    %v423 = vpop.f32.mrb[0].mxu0
    %v424 = vadd.f32 %v119, %v423
    %v425 = vpop.f32.mrb[0].mxu0
    %v426 = vadd.f32 %v123, %v425
    %427 = vmatprep.mubr.bf16.mxu0 0
    %428 = vmatmul.mubr.bf16.gmra.mrb[0].mxu0 %v145
    %v429 = vpop.f32.mrb[0].mxu0
    %v430 = vadd.f32 %v119, %v429
    %v431 = vpop.f32.mrb[0].mxu0
    %v432 = vadd.f32 %v123, %v431
    %v433 = vpop.f32.mrb[0].mxu0
    %v434 = vadd.f32 %v119, %v433
    %v435 = vpop.f32.mrb[0].mxu0
    %v436 = vadd.f32 %v123, %v435
    %437 = vmatprep.mubr.bf16.mxu0 0
    %438 = vmatmul.mubr.bf16.gmra.mrb[0].mxu0 %v146
    %v439 = vpop.f32.mrb[0].mxu0
    %v440 = vadd.f32 %v119, %v439
    %v441 = vpop.f32.mrb[0].mxu0
    %v442 = vadd.f32 %v123, %v441
    %v443 = vpop.f32.mrb[0].mxu0
    %v444 = vadd.f32 %v119, %v443
    %v445 = vpop.f32.mrb[0].mxu0
    %v446 = vadd.f32 %v123, %v445
    %447 = vmatprep.mubr.bf16.mxu0 0
    %448 = vmatmul.mubr.bf16.gmra.mrb[0].mxu0 %v147
    %v449 = vpop.f32.mrb[0].mxu0
    %v450 = vadd.f32 %v119, %v449
    %v451 = vpop.f32.mrb[0].mxu0
    %v452 = vadd.f32 %v123, %v451
    %v453 = vpop.f32.mrb[0].mxu0
    %v454 = vadd.f32 %v119, %v453
    %v455 = vpop.f32.mrb[0].mxu0
    %v456 = vadd.f32 %v123, %v455
    %457 = vdwg.mxu0
    %v458 = vld [vmem:[#allocation9] sm:$0xff]
    %v459 = vld [vmem:[#allocation9 + $0x8] sm:$0xff]
    %v460 = vld [vmem:[#allocation9 + $0x10] sm:$0xff]
    %v461 = vld [vmem:[#allocation9 + $0x18] sm:$0xff]
    %v462 = vld [vmem:[#allocation9 + $0x20] sm:$0xff]
    %v463 = vld [vmem:[#allocation9 + $0x28] sm:$0xff]
    %v464 = vld [vmem:[#allocation9 + $0x30] sm:$0xff]
    %v465 = vld [vmem:[#allocation9 + $0x38] sm:$0xff]
    %v466 = vld [vmem:[#allocation9 + $0x40] sm:$0xff]
    %v467 = vld [vmem:[#allocation9 + $0x48] sm:$0xff]
    %v468 = vld [vmem:[#allocation9 + $0x50] sm:$0xff]
    %v469 = vld [vmem:[#allocation9 + $0x58] sm:$0xff]
    %v470 = vld [vmem:[#allocation9 + $0x60] sm:$0xff]
    %v471 = vld [vmem:[#allocation9 + $0x68] sm:$0xff]
    %v472 = vld [vmem:[#allocation9 + $0x70] sm:$0xff]
    %v473 = vld [vmem:[#allocation9 + $0x78] sm:$0xff]
    %v474 = vld [vmem:[#allocation9 + $0x80] sm:$0xff]
    %v475 = vld [vmem:[#allocation9 + $0x88] sm:$0xff]
    %v476 = vld [vmem:[#allocation9 + $0x90] sm:$0xff]
    %v477 = vld [vmem:[#allocation9 + $0x98] sm:$0xff]
    %v478 = vld [vmem:[#allocation9 + $0xa0] sm:$0xff]
    %v479 = vld [vmem:[#allocation9 + $0xa8] sm:$0xff]
    %v480 = vld [vmem:[#allocation9 + $0xb0] sm:$0xff]
    %v481 = vld [vmem:[#allocation9 + $0xb8] sm:$0xff]
    %v482 = vld [vmem:[#allocation9 + $0xc0] sm:$0xff]
    %v483 = vld [vmem:[#allocation9 + $0xc8] sm:$0xff]
    %v484 = vld [vmem:[#allocation9 + $0xd0] sm:$0xff]
    %v485 = vld [vmem:[#allocation9 + $0xd8] sm:$0xff]
    %v486 = vld [vmem:[#allocation9 + $0xe0] sm:$0xff]
    %v487 = vld [vmem:[#allocation9 + $0xe8] sm:$0xff]
    %v488 = vld [vmem:[#allocation9 + $0xf0] sm:$0xff]
    %v489 = vld [vmem:[#allocation9 + $0xf8] sm:$0xff]
    %v490 = vld [vmem:[#allocation2] sm:$0xff]
    %v491 = vld [vmem:[#allocation3] sm:$0xff]
    %v492 = vpack.c.bf16 %v490, %v490
    %v525 = vunpack.c.l.b16 %v458
    %v526 = vunpack.c.h.b16 %v458
    %v527 = vunpack.c.l.b16 %v459
    %v528 = vunpack.c.h.b16 %v459
    %v529 = vunpack.c.l.b16 %v460
    %v530 = vunpack.c.h.b16 %v460
    %v531 = vunpack.c.l.b16 %v461
    %v532 = vunpack.c.h.b16 %v461
    %v533 = vunpack.c.l.b16 %v462
    %v534 = vunpack.c.h.b16 %v462
    %v535 = vunpack.c.l.b16 %v463
    %v536 = vunpack.c.h.b16 %v463
    %v537 = vunpack.c.l.b16 %v464
    %v538 = vunpack.c.h.b16 %v464
    %v539 = vunpack.c.l.b16 %v465
    %v540 = vunpack.c.h.b16 %v465
    %v541 = vunpack.c.l.b16 %v466
    %v542 = vunpack.c.h.b16 %v466
    %v543 = vunpack.c.l.b16 %v467
    %v544 = vunpack.c.h.b16 %v467
    %v545 = vunpack.c.l.b16 %v468
    %v546 = vunpack.c.h.b16 %v468
    %v547 = vunpack.c.l.b16 %v469
    %v548 = vunpack.c.h.b16 %v469
    %v549 = vunpack.c.l.b16 %v470
    %v550 = vunpack.c.h.b16 %v470
    %v551 = vunpack.c.l.b16 %v471
    %v552 = vunpack.c.h.b16 %v471
    %v553 = vunpack.c.l.b16 %v472
    %v554 = vunpack.c.h.b16 %v472
    %v555 = vunpack.c.l.b16 %v473
    %v556 = vunpack.c.h.b16 %v473
    %v557 = vunpack.c.l.b16 %v474
    %v558 = vunpack.c.h.b16 %v474
    %v559 = vunpack.c.l.b16 %v475
    %v560 = vunpack.c.h.b16 %v475
    %v561 = vunpack.c.l.b16 %v476
    %v562 = vunpack.c.h.b16 %v476
    %v563 = vunpack.c.l.b16 %v477
    %v564 = vunpack.c.h.b16 %v477
    %v565 = vunpack.c.l.b16 %v478
    %v566 = vunpack.c.h.b16 %v478
    %v567 = vunpack.c.l.b16 %v479
    %v568 = vunpack.c.h.b16 %v479
    %v569 = vunpack.c.l.b16 %v480
    %v570 = vunpack.c.h.b16 %v480
    %v571 = vunpack.c.l.b16 %v481
    %v572 = vunpack.c.h.b16 %v481
    %v573 = vunpack.c.l.b16 %v482
    %v574 = vunpack.c.h.b16 %v482
    %v575 = vunpack.c.l.b16 %v483
    %v576 = vunpack.c.h.b16 %v483
    %v577 = vunpack.c.l.b16 %v484
    %v578 = vunpack.c.h.b16 %v484
    %v579 = vunpack.c.l.b16 %v485
    %v580 = vunpack.c.h.b16 %v485
    %v581 = vunpack.c.l.b16 %v486
    %v582 = vunpack.c.h.b16 %v486
    %v583 = vunpack.c.l.b16 %v487
    %v584 = vunpack.c.h.b16 %v487
    %v585 = vunpack.c.l.b16 %v488
    %v586 = vunpack.c.h.b16 %v488
    %v587 = vunpack.c.l.b16 %v489
    %v588 = vunpack.c.h.b16 %v489
    %v589 = vpack.c.b16 %v529, %v525
    %v590 = vpack.c.b16 %v530, %v526
    %v591 = vpack.c.b16 %v531, %v527
    %v592 = vpack.c.b16 %v532, %v528
    %v593 = vpack.c.b16 %v537, %v533
    %v594 = vpack.c.b16 %v538, %v534
    %v595 = vpack.c.b16 %v539, %v535
    %v596 = vpack.c.b16 %v540, %v536
    %v597 = vpack.c.b16 %v545, %v541
    %v598 = vpack.c.b16 %v546, %v542
    %v599 = vpack.c.b16 %v547, %v543
    %v600 = vpack.c.b16 %v548, %v544
    %v601 = vpack.c.b16 %v553, %v549
    %v602 = vpack.c.b16 %v554, %v550
    %v603 = vpack.c.b16 %v555, %v551
    %v604 = vpack.c.b16 %v556, %v552
    %v605 = vpack.c.b16 %v561, %v557
    %v606 = vpack.c.b16 %v562, %v558
    %v607 = vpack.c.b16 %v563, %v559
    %v608 = vpack.c.b16 %v564, %v560
    %v609 = vpack.c.b16 %v569, %v565
    %v610 = vpack.c.b16 %v570, %v566
    %v611 = vpack.c.b16 %v571, %v567
    %v612 = vpack.c.b16 %v572, %v568
    %v613 = vpack.c.b16 %v577, %v573
    %v614 = vpack.c.b16 %v578, %v574
    %v615 = vpack.c.b16 %v579, %v575
    %v616 = vpack.c.b16 %v580, %v576
    %v617 = vpack.c.b16 %v585, %v581
    %v618 = vpack.c.b16 %v586, %v582
    %v619 = vpack.c.b16 %v587, %v583
    %v620 = vpack.c.b16 %v588, %v584
    %653 = vmatprep.subr.bf16.mxu0 %v590
    %654 = vmatpush1.bf16.msra.mxu0 %v589
    %655 = vmatprep.subr.bf16.mxu0 %v594
    %656 = vmatpush1.bf16.msra.mxu0 %v593
    %657 = vmatprep.subr.bf16.mxu0 %v598
    %658 = vmatpush1.bf16.msra.mxu0 %v597
    %659 = vmatprep.subr.bf16.mxu0 %v602
    %660 = vmatpush1.bf16.msra.mxu0 %v601
    %661 = vmatprep.subr.bf16.mxu0 %v606
    %662 = vmatpush1.bf16.msra.mxu0 %v605
    %663 = vmatprep.subr.bf16.mxu0 %v610
    %664 = vmatpush1.bf16.msra.mxu0 %v609
    %665 = vmatprep.subr.bf16.mxu0 %v614
    %666 = vmatpush1.bf16.msra.mxu0 %v613
    %667 = vmatprep.subr.bf16.mxu0 %v618
    %668 = vmatpush1.bf16.msra.mxu0 %v617
    %669 = vmatprep.subr.bf16.mxu0 0
    %670 = vmatpush1.bf16.msra.mxu0 0
    %671 = vmatprep.subr.bf16.mxu0 0
    %672 = vmatpush1.bf16.msra.mxu0 0
    %673 = vmatprep.subr.bf16.mxu0 0
    %674 = vmatpush1.bf16.msra.mxu0 0
    %675 = vmatprep.subr.bf16.mxu0 0
    %676 = vmatpush1.bf16.msra.mxu0 0
    %677 = vmatprep.subr.bf16.mxu0 0
    %678 = vmatpush1.bf16.msra.mxu0 0
    %679 = vmatprep.subr.bf16.mxu0 0
    %680 = vmatpush1.bf16.msra.mxu0 0
    %681 = vmatprep.subr.bf16.mxu0 0
    %682 = vmatpush1.bf16.msra.mxu0 0
    %683 = vmatprep.subr.bf16.mxu0 0
    %684 = vmatpush1.bf16.msra.mxu0 0
    %685 = vmatprep.mubr.bf16.mxu0 0
    %686 = vmatmul.mubr.bf16.gmra.mrb[0].mxu0 %v492
    %v687 = vpop.f32.mrb[0].mxu0
    %v688 = vadd.f32 0.0, %v687
    %v689 = vpop.f32.mrb[0].mxu0
    %v690 = vadd.f32 0.0, %v689
    %v691 = vpop.f32.mrb[0].mxu0
    %v692 = vpop.f32.mrb[0].mxu0
    %693 = vdwg.mxu0
    %694 = vmatprep.subr.bf16.mxu0 %v592
    %695 = vmatpush1.bf16.msra.mxu0 %v591
    %696 = vmatprep.subr.bf16.mxu0 %v596
    %697 = vmatpush1.bf16.msra.mxu0 %v595
    %698 = vmatprep.subr.bf16.mxu0 %v600
    %699 = vmatpush1.bf16.msra.mxu0 %v599
    %700 = vmatprep.subr.bf16.mxu0 %v604
    %701 = vmatpush1.bf16.msra.mxu0 %v603
    %702 = vmatprep.subr.bf16.mxu0 %v608
    %703 = vmatpush1.bf16.msra.mxu0 %v607
    %704 = vmatprep.subr.bf16.mxu0 %v612
    %705 = vmatpush1.bf16.msra.mxu0 %v611
    %706 = vmatprep.subr.bf16.mxu0 %v616
    %707 = vmatpush1.bf16.msra.mxu0 %v615
    %708 = vmatprep.subr.bf16.mxu0 %v620
    %709 = vmatpush1.bf16.msra.mxu0 %v619
    %710 = vmatprep.subr.bf16.mxu0 0
    %711 = vmatpush1.bf16.msra.mxu0 0
    %712 = vmatprep.subr.bf16.mxu0 0
    %713 = vmatpush1.bf16.msra.mxu0 0
    %714 = vmatprep.subr.bf16.mxu0 0
    %715 = vmatpush1.bf16.msra.mxu0 0
    %716 = vmatprep.subr.bf16.mxu0 0
    %717 = vmatpush1.bf16.msra.mxu0 0
    %718 = vmatprep.subr.bf16.mxu0 0
    %719 = vmatpush1.bf16.msra.mxu0 0
    %720 = vmatprep.subr.bf16.mxu0 0
    %721 = vmatpush1.bf16.msra.mxu0 0
    %722 = vmatprep.subr.bf16.mxu0 0
    %723 = vmatpush1.bf16.msra.mxu0 0
    %724 = vmatprep.subr.bf16.mxu0 0
    %725 = vmatpush1.bf16.msra.mxu0 0
    %726 = vmatprep.mubr.bf16.mxu0 0
    %727 = vmatmul.mubr.bf16.gmra.mrb[0].mxu0 %v492
    %v728 = vpop.f32.mrb[0].mxu0
    %v729 = vadd.f32 0.0, %v728
    %v730 = vpop.f32.mrb[0].mxu0
    %v731 = vadd.f32 0.0, %v730
    %v732 = vpop.f32.mrb[0].mxu0
    %v733 = vpop.f32.mrb[0].mxu0
    %734 = vdwg.mxu0
    %v735 = vadd.f32 %v347, %v688
    %v736 = vadd.f32 %v349, %v690
    %v737 = vadd.f32 %v420, %v729
    %v738 = vadd.f32 %v422, %v731
    %v739 = vmul.f32 %v735, 0.5
    %v740 = vtanh.pop %v739
    %v741 = vmul.f32 %v740, 0.5
    %v742 = vadd.f32 %v741, 0.5
    %v743 = vmul.f32 %v736, 0.5
    %v744 = vtanh.pop %v743
    %v745 = vmul.f32 %v744, 0.5
    %v746 = vadd.f32 %v745, 0.5
    %v747 = vtanh.pop %v737
    %v748 = vmul.f32 %v738, 0.5
    %v749 = vtanh.pop %v748
    %v750 = vmul.f32 %v749, 0.5
    %v751 = vadd.f32 %v750, 0.5
    %v752 = vmul.f32 %v746, %v491
    %v753 = vmul.f32 %v742, %v747
    %v754 = vadd.f32 %v752, %v753
    %v755 = vtanh.pop %v754
    %v756 = vmul.f32 %v751, %v755
    %v757 = vpack.c.bf16 %v756, %v756
    %758 = vst [vmem:[#allocation10] sm:$0xf] %v757
    %759 = vmatprep.subr.bf16.mxu0 %v590
    %760 = vmatpush1.bf16.msra.mxu0 %v589
    %761 = vmatprep.subr.bf16.mxu0 %v594
    %762 = vmatpush1.bf16.msra.mxu0 %v593
    %763 = vmatprep.subr.bf16.mxu0 %v598
    %764 = vmatpush1.bf16.msra.mxu0 %v597
    %765 = vmatprep.subr.bf16.mxu0 %v602
    %766 = vmatpush1.bf16.msra.mxu0 %v601
    %767 = vmatprep.subr.bf16.mxu0 %v606
    %768 = vmatpush1.bf16.msra.mxu0 %v605
    %769 = vmatprep.subr.bf16.mxu0 %v610
    %770 = vmatpush1.bf16.msra.mxu0 %v609
    %771 = vmatprep.subr.bf16.mxu0 %v614
    %772 = vmatpush1.bf16.msra.mxu0 %v613
    %773 = vmatprep.subr.bf16.mxu0 %v618
    %774 = vmatpush1.bf16.msra.mxu0 %v617
    %775 = vmatprep.subr.bf16.mxu0 0
    %776 = vmatpush1.bf16.msra.mxu0 0
    %777 = vmatprep.subr.bf16.mxu0 0
    %778 = vmatpush1.bf16.msra.mxu0 0
    %779 = vmatprep.subr.bf16.mxu0 0
    %780 = vmatpush1.bf16.msra.mxu0 0
    %781 = vmatprep.subr.bf16.mxu0 0
    %782 = vmatpush1.bf16.msra.mxu0 0
    %783 = vmatprep.subr.bf16.mxu0 0
    %784 = vmatpush1.bf16.msra.mxu0 0
    %785 = vmatprep.subr.bf16.mxu0 0
    %786 = vmatpush1.bf16.msra.mxu0 0
    %787 = vmatprep.subr.bf16.mxu0 0
    %788 = vmatpush1.bf16.msra.mxu0 0
    %789 = vmatprep.subr.bf16.mxu0 0
    %790 = vmatpush1.bf16.msra.mxu0 0
    %791 = vmatprep.mubr.bf16.mxu0 0
    %792 = vmatmul.mubr.bf16.gmra.mrb[0].mxu0 %v757
    %v793 = vpop.f32.mrb[0].mxu0
    %v794 = vadd.f32 0.0, %v793
    %v795 = vpop.f32.mrb[0].mxu0
    %v796 = vadd.f32 0.0, %v795
    %v797 = vpop.f32.mrb[0].mxu0
    %v798 = vpop.f32.mrb[0].mxu0
    %799 = vdwg.mxu0
    %800 = vmatprep.subr.bf16.mxu0 %v592
    %801 = vmatpush1.bf16.msra.mxu0 %v591
    %802 = vmatprep.subr.bf16.mxu0 %v596
    %803 = vmatpush1.bf16.msra.mxu0 %v595
    %804 = vmatprep.subr.bf16.mxu0 %v600
    %805 = vmatpush1.bf16.msra.mxu0 %v599
    %806 = vmatprep.subr.bf16.mxu0 %v604
    %807 = vmatpush1.bf16.msra.mxu0 %v603
    %808 = vmatprep.subr.bf16.mxu0 %v608
    %809 = vmatpush1.bf16.msra.mxu0 %v607
    %810 = vmatprep.subr.bf16.mxu0 %v612
    %811 = vmatpush1.bf16.msra.mxu0 %v611
    %812 = vmatprep.subr.bf16.mxu0 %v616
    %813 = vmatpush1.bf16.msra.mxu0 %v615
    %814 = vmatprep.subr.bf16.mxu0 %v620
    %815 = vmatpush1.bf16.msra.mxu0 %v619
    %816 = vmatprep.subr.bf16.mxu0 0
    %817 = vmatpush1.bf16.msra.mxu0 0
    %818 = vmatprep.subr.bf16.mxu0 0
    %819 = vmatpush1.bf16.msra.mxu0 0
    %820 = vmatprep.subr.bf16.mxu0 0
    %821 = vmatpush1.bf16.msra.mxu0 0
    %822 = vmatprep.subr.bf16.mxu0 0
    %823 = vmatpush1.bf16.msra.mxu0 0
    %824 = vmatprep.subr.bf16.mxu0 0
    %825 = vmatpush1.bf16.msra.mxu0 0
    %826 = vmatprep.subr.bf16.mxu0 0
    %827 = vmatpush1.bf16.msra.mxu0 0
    %828 = vmatprep.subr.bf16.mxu0 0
    %829 = vmatpush1.bf16.msra.mxu0 0
    %830 = vmatprep.subr.bf16.mxu0 0
    %831 = vmatpush1.bf16.msra.mxu0 0
    %832 = vmatprep.mubr.bf16.mxu0 0
    %833 = vmatmul.mubr.bf16.gmra.mrb[0].mxu0 %v757
    %v834 = vpop.f32.mrb[0].mxu0
    %v835 = vadd.f32 0.0, %v834
    %v836 = vpop.f32.mrb[0].mxu0
    %v837 = vadd.f32 0.0, %v836
    %v838 = vpop.f32.mrb[0].mxu0
    %v839 = vpop.f32.mrb[0].mxu0
    %840 = vdwg.mxu0
    %v841 = vadd.f32 %v351, %v794
    %v842 = vadd.f32 %v353, %v796
    %v843 = vadd.f32 %v424, %v835
    %v844 = vadd.f32 %v426, %v837
    %v845 = vmul.f32 %v841, 0.5
    %v846 = vtanh.pop %v845
    %v847 = vmul.f32 %v846, 0.5
    %v848 = vadd.f32 %v847, 0.5
    %v849 = vmul.f32 %v842, 0.5
    %v850 = vtanh.pop %v849
    %v851 = vmul.f32 %v850, 0.5
    %v852 = vadd.f32 %v851, 0.5
    %v853 = vtanh.pop %v843
    %v854 = vmul.f32 %v844, 0.5
    %v855 = vtanh.pop %v854
    %v856 = vmul.f32 %v855, 0.5
    %v857 = vadd.f32 %v856, 0.5
    %v858 = vmul.f32 %v852, %v754
    %v859 = vmul.f32 %v848, %v853
    %v860 = vadd.f32 %v858, %v859
    %v861 = vtanh.pop %v860
    %v862 = vmul.f32 %v857, %v861
    %v863 = vpack.c.bf16 %v862, %v862
    %864 = vst [vmem:[#allocation10 + $0x4] sm:$0xf] %v863
    %865 = vmatprep.subr.bf16.mxu0 %v590
    %866 = vmatpush1.bf16.msra.mxu0 %v589
    %867 = vmatprep.subr.bf16.mxu0 %v594
    %868 = vmatpush1.bf16.msra.mxu0 %v593
    %869 = vmatprep.subr.bf16.mxu0 %v598
    %870 = vmatpush1.bf16.msra.mxu0 %v597
    %871 = vmatprep.subr.bf16.mxu0 %v602
    %872 = vmatpush1.bf16.msra.mxu0 %v601
    %873 = vmatprep.subr.bf16.mxu0 %v606
    %874 = vmatpush1.bf16.msra.mxu0 %v605
    %875 = vmatprep.subr.bf16.mxu0 %v610
    %876 = vmatpush1.bf16.msra.mxu0 %v609
    %877 = vmatprep.subr.bf16.mxu0 %v614
    %878 = vmatpush1.bf16.msra.mxu0 %v613
    %879 = vmatprep.subr.bf16.mxu0 %v618
    %880 = vmatpush1.bf16.msra.mxu0 %v617
    %881 = vmatprep.subr.bf16.mxu0 0
    %882 = vmatpush1.bf16.msra.mxu0 0
    %883 = vmatprep.subr.bf16.mxu0 0
    %884 = vmatpush1.bf16.msra.mxu0 0
    %885 = vmatprep.subr.bf16.mxu0 0
    %886 = vmatpush1.bf16.msra.mxu0 0
    %887 = vmatprep.subr.bf16.mxu0 0
    %888 = vmatpush1.bf16.msra.mxu0 0
    %889 = vmatprep.subr.bf16.mxu0 0
    %890 = vmatpush1.bf16.msra.mxu0 0
    %891 = vmatprep.subr.bf16.mxu0 0
    %892 = vmatpush1.bf16.msra.mxu0 0
    %893 = vmatprep.subr.bf16.mxu0 0
    %894 = vmatpush1.bf16.msra.mxu0 0
    %895 = vmatprep.subr.bf16.mxu0 0
    %896 = vmatpush1.bf16.msra.mxu0 0
    %897 = vmatprep.mubr.bf16.mxu0 0
    %898 = vmatmul.mubr.bf16.gmra.mrb[0].mxu0 %v863
    %v899 = vpop.f32.mrb[0].mxu0
    %v900 = vadd.f32 0.0, %v899
    %v901 = vpop.f32.mrb[0].mxu0
    %v902 = vadd.f32 0.0, %v901
    %v903 = vpop.f32.mrb[0].mxu0
    %v904 = vpop.f32.mrb[0].mxu0
    %905 = vdwg.mxu0
    %906 = vmatprep.subr.bf16.mxu0 %v592
    %907 = vmatpush1.bf16.msra.mxu0 %v591
    %908 = vmatprep.subr.bf16.mxu0 %v596
    %909 = vmatpush1.bf16.msra.mxu0 %v595
    %910 = vmatprep.subr.bf16.mxu0 %v600
    %911 = vmatpush1.bf16.msra.mxu0 %v599
    %912 = vmatprep.subr.bf16.mxu0 %v604
    %913 = vmatpush1.bf16.msra.mxu0 %v603
    %914 = vmatprep.subr.bf16.mxu0 %v608
    %915 = vmatpush1.bf16.msra.mxu0 %v607
    %916 = vmatprep.subr.bf16.mxu0 %v612
    %917 = vmatpush1.bf16.msra.mxu0 %v611
    %918 = vmatprep.subr.bf16.mxu0 %v616
    %919 = vmatpush1.bf16.msra.mxu0 %v615
    %920 = vmatprep.subr.bf16.mxu0 %v620
    %921 = vmatpush1.bf16.msra.mxu0 %v619
    %922 = vmatprep.subr.bf16.mxu0 0
    %923 = vmatpush1.bf16.msra.mxu0 0
    %924 = vmatprep.subr.bf16.mxu0 0
    %925 = vmatpush1.bf16.msra.mxu0 0
    %926 = vmatprep.subr.bf16.mxu0 0
    %927 = vmatpush1.bf16.msra.mxu0 0
    %928 = vmatprep.subr.bf16.mxu0 0
    %929 = vmatpush1.bf16.msra.mxu0 0
    %930 = vmatprep.subr.bf16.mxu0 0
    %931 = vmatpush1.bf16.msra.mxu0 0
    %932 = vmatprep.subr.bf16.mxu0 0
    %933 = vmatpush1.bf16.msra.mxu0 0
    %934 = vmatprep.subr.bf16.mxu0 0
    %935 = vmatpush1.bf16.msra.mxu0 0
    %936 = vmatprep.subr.bf16.mxu0 0
    %937 = vmatpush1.bf16.msra.mxu0 0
    %938 = vmatprep.mubr.bf16.mxu0 0
    %939 = vmatmul.mubr.bf16.gmra.mrb[0].mxu0 %v863
    %v940 = vpop.f32.mrb[0].mxu0
    %v941 = vadd.f32 0.0, %v940
    %v942 = vpop.f32.mrb[0].mxu0
    %v943 = vadd.f32 0.0, %v942
    %v944 = vpop.f32.mrb[0].mxu0
    %v945 = vpop.f32.mrb[0].mxu0
    %946 = vdwg.mxu0
    %v947 = vadd.f32 %v357, %v900
    %v948 = vadd.f32 %v359, %v902
    %v949 = vadd.f32 %v430, %v941
    %v950 = vadd.f32 %v432, %v943
    %v951 = vmul.f32 %v947, 0.5
    %v952 = vtanh.pop %v951
    %v953 = vmul.f32 %v952, 0.5
    %v954 = vadd.f32 %v953, 0.5
    %v955 = vmul.f32 %v948, 0.5
    %v956 = vtanh.pop %v955
    %v957 = vmul.f32 %v956, 0.5
    %v958 = vadd.f32 %v957, 0.5
    %v959 = vtanh.pop %v949
    %v960 = vmul.f32 %v950, 0.5
    %v961 = vtanh.pop %v960
    %v962 = vmul.f32 %v961, 0.5
    %v963 = vadd.f32 %v962, 0.5
    %v964 = vmul.f32 %v958, %v860
    %v965 = vmul.f32 %v954, %v959
    %v966 = vadd.f32 %v964, %v965
    %v967 = vtanh.pop %v966
    %v968 = vmul.f32 %v963, %v967
    %v969 = vpack.c.bf16 %v968, %v968
    %970 = vst [vmem:[#allocation10 + $0x8] sm:$0xf] %v969
    %971 = vmatprep.subr.bf16.mxu0 %v590
    %972 = vmatpush1.bf16.msra.mxu0 %v589
    %973 = vmatprep.subr.bf16.mxu0 %v594
    %974 = vmatpush1.bf16.msra.mxu0 %v593
    %975 = vmatprep.subr.bf16.mxu0 %v598
    %976 = vmatpush1.bf16.msra.mxu0 %v597
    %977 = vmatprep.subr.bf16.mxu0 %v602
    %978 = vmatpush1.bf16.msra.mxu0 %v601
    %979 = vmatprep.subr.bf16.mxu0 %v606
    %980 = vmatpush1.bf16.msra.mxu0 %v605
    %981 = vmatprep.subr.bf16.mxu0 %v610
    %982 = vmatpush1.bf16.msra.mxu0 %v609
    %983 = vmatprep.subr.bf16.mxu0 %v614
    %984 = vmatpush1.bf16.msra.mxu0 %v613
    %985 = vmatprep.subr.bf16.mxu0 %v618
    %986 = vmatpush1.bf16.msra.mxu0 %v617
    %987 = vmatprep.subr.bf16.mxu0 0
    %988 = vmatpush1.bf16.msra.mxu0 0
    %989 = vmatprep.subr.bf16.mxu0 0
    %990 = vmatpush1.bf16.msra.mxu0 0
    %991 = vmatprep.subr.bf16.mxu0 0
    %992 = vmatpush1.bf16.msra.mxu0 0
    %993 = vmatprep.subr.bf16.mxu0 0
    %994 = vmatpush1.bf16.msra.mxu0 0
    %995 = vmatprep.subr.bf16.mxu0 0
    %996 = vmatpush1.bf16.msra.mxu0 0
    %997 = vmatprep.subr.bf16.mxu0 0
    %998 = vmatpush1.bf16.msra.mxu0 0
    %999 = vmatprep.subr.bf16.mxu0 0
    %1000 = vmatpush1.bf16.msra.mxu0 0
    %1001 = vmatprep.subr.bf16.mxu0 0
    %1002 = vmatpush1.bf16.msra.mxu0 0
    %1003 = vmatprep.mubr.bf16.mxu0 0
    %1004 = vmatmul.mubr.bf16.gmra.mrb[0].mxu0 %v969
    %v1005 = vpop.f32.mrb[0].mxu0
    %v1006 = vadd.f32 0.0, %v1005
    %v1007 = vpop.f32.mrb[0].mxu0
    %v1008 = vadd.f32 0.0, %v1007
    %v1009 = vpop.f32.mrb[0].mxu0
    %v1010 = vpop.f32.mrb[0].mxu0
    %1011 = vdwg.mxu0
    %1012 = vmatprep.subr.bf16.mxu0 %v592
    %1013 = vmatpush1.bf16.msra.mxu0 %v591
    %1014 = vmatprep.subr.bf16.mxu0 %v596
    %1015 = vmatpush1.bf16.msra.mxu0 %v595
    %1016 = vmatprep.subr.bf16.mxu0 %v600
    %1017 = vmatpush1.bf16.msra.mxu0 %v599
    %1018 = vmatprep.subr.bf16.mxu0 %v604
    %1019 = vmatpush1.bf16.msra.mxu0 %v603
    %1020 = vmatprep.subr.bf16.mxu0 %v608
    %1021 = vmatpush1.bf16.msra.mxu0 %v607
    %1022 = vmatprep.subr.bf16.mxu0 %v612
    %1023 = vmatpush1.bf16.msra.mxu0 %v611
    %1024 = vmatprep.subr.bf16.mxu0 %v616
    %1025 = vmatpush1.bf16.msra.mxu0 %v615
    %1026 = vmatprep.subr.bf16.mxu0 %v620
    %1027 = vmatpush1.bf16.msra.mxu0 %v619
    %1028 = vmatprep.subr.bf16.mxu0 0
    %1029 = vmatpush1.bf16.msra.mxu0 0
    %1030 = vmatprep.subr.bf16.mxu0 0
    %1031 = vmatpush1.bf16.msra.mxu0 0
    %1032 = vmatprep.subr.bf16.mxu0 0
    %1033 = vmatpush1.bf16.msra.mxu0 0
    %1034 = vmatprep.subr.bf16.mxu0 0
    %1035 = vmatpush1.bf16.msra.mxu0 0
    %1036 = vmatprep.subr.bf16.mxu0 0
    %1037 = vmatpush1.bf16.msra.mxu0 0
    %1038 = vmatprep.subr.bf16.mxu0 0
    %1039 = vmatpush1.bf16.msra.mxu0 0
    %1040 = vmatprep.subr.bf16.mxu0 0
    %1041 = vmatpush1.bf16.msra.mxu0 0
    %1042 = vmatprep.subr.bf16.mxu0 0
    %1043 = vmatpush1.bf16.msra.mxu0 0
    %1044 = vmatprep.mubr.bf16.mxu0 0
    %1045 = vmatmul.mubr.bf16.gmra.mrb[0].mxu0 %v969
    %v1046 = vpop.f32.mrb[0].mxu0
    %v1047 = vadd.f32 0.0, %v1046
    %v1048 = vpop.f32.mrb[0].mxu0
    %v1049 = vadd.f32 0.0, %v1048
    %v1050 = vpop.f32.mrb[0].mxu0
    %v1051 = vpop.f32.mrb[0].mxu0
    %1052 = vdwg.mxu0
    %v1053 = vadd.f32 %v361, %v1006
    %v1054 = vadd.f32 %v363, %v1008
    %v1055 = vadd.f32 %v434, %v1047
    %v1056 = vadd.f32 %v436, %v1049
    %v1057 = vmul.f32 %v1053, 0.5
    %v1058 = vtanh.pop %v1057
    %v1059 = vmul.f32 %v1058, 0.5
    %v1060 = vadd.f32 %v1059, 0.5
    %v1061 = vmul.f32 %v1054, 0.5
    %v1062 = vtanh.pop %v1061
    %v1063 = vmul.f32 %v1062, 0.5
    %v1064 = vadd.f32 %v1063, 0.5
    %v1065 = vtanh.pop %v1055
    %v1066 = vmul.f32 %v1056, 0.5
    %v1067 = vtanh.pop %v1066
    %v1068 = vmul.f32 %v1067, 0.5
    %v1069 = vadd.f32 %v1068, 0.5
    %v1070 = vmul.f32 %v1064, %v966
    %v1071 = vmul.f32 %v1060, %v1065
    %v1072 = vadd.f32 %v1070, %v1071
    %v1073 = vtanh.pop %v1072
    %v1074 = vmul.f32 %v1069, %v1073
    %v1075 = vpack.c.bf16 %v1074, %v1074
    %1076 = vst [vmem:[#allocation10 + $0xc] sm:$0xf] %v1075
    %1077 = vmatprep.subr.bf16.mxu0 %v590
    %1078 = vmatpush1.bf16.msra.mxu0 %v589
    %1079 = vmatprep.subr.bf16.mxu0 %v594
    %1080 = vmatpush1.bf16.msra.mxu0 %v593
    %1081 = vmatprep.subr.bf16.mxu0 %v598
    %1082 = vmatpush1.bf16.msra.mxu0 %v597
    %1083 = vmatprep.subr.bf16.mxu0 %v602
    %1084 = vmatpush1.bf16.msra.mxu0 %v601
    %1085 = vmatprep.subr.bf16.mxu0 %v606
    %1086 = vmatpush1.bf16.msra.mxu0 %v605
    %1087 = vmatprep.subr.bf16.mxu0 %v610
    %1088 = vmatpush1.bf16.msra.mxu0 %v609
    %1089 = vmatprep.subr.bf16.mxu0 %v614
    %1090 = vmatpush1.bf16.msra.mxu0 %v613
    %1091 = vmatprep.subr.bf16.mxu0 %v618
    %1092 = vmatpush1.bf16.msra.mxu0 %v617
    %1093 = vmatprep.subr.bf16.mxu0 0
    %1094 = vmatpush1.bf16.msra.mxu0 0
    %1095 = vmatprep.subr.bf16.mxu0 0
    %1096 = vmatpush1.bf16.msra.mxu0 0
    %1097 = vmatprep.subr.bf16.mxu0 0
    %1098 = vmatpush1.bf16.msra.mxu0 0
    %1099 = vmatprep.subr.bf16.mxu0 0
    %1100 = vmatpush1.bf16.msra.mxu0 0
    %1101 = vmatprep.subr.bf16.mxu0 0
    %1102 = vmatpush1.bf16.msra.mxu0 0
    %1103 = vmatprep.subr.bf16.mxu0 0
    %1104 = vmatpush1.bf16.msra.mxu0 0
    %1105 = vmatprep.subr.bf16.mxu0 0
    %1106 = vmatpush1.bf16.msra.mxu0 0
    %1107 = vmatprep.subr.bf16.mxu0 0
    %1108 = vmatpush1.bf16.msra.mxu0 0
    %1109 = vmatprep.mubr.bf16.mxu0 0
    %1110 = vmatmul.mubr.bf16.gmra.mrb[0].mxu0 %v1075
    %v1111 = vpop.f32.mrb[0].mxu0
    %v1112 = vadd.f32 0.0, %v1111
    %v1113 = vpop.f32.mrb[0].mxu0
    %v1114 = vadd.f32 0.0, %v1113
    %v1115 = vpop.f32.mrb[0].mxu0
    %v1116 = vpop.f32.mrb[0].mxu0
    %1117 = vdwg.mxu0
    %1118 = vmatprep.subr.bf16.mxu0 %v592
    %1119 = vmatpush1.bf16.msra.mxu0 %v591
    %1120 = vmatprep.subr.bf16.mxu0 %v596
    %1121 = vmatpush1.bf16.msra.mxu0 %v595
    %1122 = vmatprep.subr.bf16.mxu0 %v600
    %1123 = vmatpush1.bf16.msra.mxu0 %v599
    %1124 = vmatprep.subr.bf16.mxu0 %v604
    %1125 = vmatpush1.bf16.msra.mxu0 %v603
    %1126 = vmatprep.subr.bf16.mxu0 %v608
    %1127 = vmatpush1.bf16.msra.mxu0 %v607
    %1128 = vmatprep.subr.bf16.mxu0 %v612
    %1129 = vmatpush1.bf16.msra.mxu0 %v611
    %1130 = vmatprep.subr.bf16.mxu0 %v616
    %1131 = vmatpush1.bf16.msra.mxu0 %v615
    %1132 = vmatprep.subr.bf16.mxu0 %v620
    %1133 = vmatpush1.bf16.msra.mxu0 %v619
    %1134 = vmatprep.subr.bf16.mxu0 0
    %1135 = vmatpush1.bf16.msra.mxu0 0
    %1136 = vmatprep.subr.bf16.mxu0 0
    %1137 = vmatpush1.bf16.msra.mxu0 0
    %1138 = vmatprep.subr.bf16.mxu0 0
    %1139 = vmatpush1.bf16.msra.mxu0 0
    %1140 = vmatprep.subr.bf16.mxu0 0
    %1141 = vmatpush1.bf16.msra.mxu0 0
    %1142 = vmatprep.subr.bf16.mxu0 0
    %1143 = vmatpush1.bf16.msra.mxu0 0
    %1144 = vmatprep.subr.bf16.mxu0 0
    %1145 = vmatpush1.bf16.msra.mxu0 0
    %1146 = vmatprep.subr.bf16.mxu0 0
    %1147 = vmatpush1.bf16.msra.mxu0 0
    %1148 = vmatprep.subr.bf16.mxu0 0
    %1149 = vmatpush1.bf16.msra.mxu0 0
    %1150 = vmatprep.mubr.bf16.mxu0 0
    %1151 = vmatmul.mubr.bf16.gmra.mrb[0].mxu0 %v1075
    %v1152 = vpop.f32.mrb[0].mxu0
    %v1153 = vadd.f32 0.0, %v1152
    %v1154 = vpop.f32.mrb[0].mxu0
    %v1155 = vadd.f32 0.0, %v1154
    %v1156 = vpop.f32.mrb[0].mxu0
    %v1157 = vpop.f32.mrb[0].mxu0
    %1158 = vdwg.mxu0
    %v1159 = vadd.f32 %v367, %v1112
    %v1160 = vadd.f32 %v369, %v1114
    %v1161 = vadd.f32 %v440, %v1153
    %v1162 = vadd.f32 %v442, %v1155
    %v1163 = vmul.f32 %v1159, 0.5
    %v1164 = vtanh.pop %v1163
    %v1165 = vmul.f32 %v1164, 0.5
    %v1166 = vadd.f32 %v1165, 0.5
    %v1167 = vmul.f32 %v1160, 0.5
    %v1168 = vtanh.pop %v1167
    %v1169 = vmul.f32 %v1168, 0.5
    %v1170 = vadd.f32 %v1169, 0.5
    %v1171 = vtanh.pop %v1161
    %v1172 = vmul.f32 %v1162, 0.5
    %v1173 = vtanh.pop %v1172
    %v1174 = vmul.f32 %v1173, 0.5
    %v1175 = vadd.f32 %v1174, 0.5
    %v1176 = vmul.f32 %v1170, %v1072
    %v1177 = vmul.f32 %v1166, %v1171
    %v1178 = vadd.f32 %v1176, %v1177
    %v1179 = vtanh.pop %v1178
    %v1180 = vmul.f32 %v1175, %v1179
    %v1181 = vpack.c.bf16 %v1180, %v1180
    %1182 = vst [vmem:[#allocation10 + $0x10] sm:$0xf] %v1181
    %1183 = vmatprep.subr.bf16.mxu0 %v590
    %1184 = vmatpush1.bf16.msra.mxu0 %v589
    %1185 = vmatprep.subr.bf16.mxu0 %v594
    %1186 = vmatpush1.bf16.msra.mxu0 %v593
    %1187 = vmatprep.subr.bf16.mxu0 %v598
    %1188 = vmatpush1.bf16.msra.mxu0 %v597
    %1189 = vmatprep.subr.bf16.mxu0 %v602
    %1190 = vmatpush1.bf16.msra.mxu0 %v601
    %1191 = vmatprep.subr.bf16.mxu0 %v606
    %1192 = vmatpush1.bf16.msra.mxu0 %v605
    %1193 = vmatprep.subr.bf16.mxu0 %v610
    %1194 = vmatpush1.bf16.msra.mxu0 %v609
    %1195 = vmatprep.subr.bf16.mxu0 %v614
    %1196 = vmatpush1.bf16.msra.mxu0 %v613
    %1197 = vmatprep.subr.bf16.mxu0 %v618
    %1198 = vmatpush1.bf16.msra.mxu0 %v617
    %1199 = vmatprep.subr.bf16.mxu0 0
    %1200 = vmatpush1.bf16.msra.mxu0 0
    %1201 = vmatprep.subr.bf16.mxu0 0
    %1202 = vmatpush1.bf16.msra.mxu0 0
    %1203 = vmatprep.subr.bf16.mxu0 0
    %1204 = vmatpush1.bf16.msra.mxu0 0
    %1205 = vmatprep.subr.bf16.mxu0 0
    %1206 = vmatpush1.bf16.msra.mxu0 0
    %1207 = vmatprep.subr.bf16.mxu0 0
    %1208 = vmatpush1.bf16.msra.mxu0 0
    %1209 = vmatprep.subr.bf16.mxu0 0
    %1210 = vmatpush1.bf16.msra.mxu0 0
    %1211 = vmatprep.subr.bf16.mxu0 0
    %1212 = vmatpush1.bf16.msra.mxu0 0
    %1213 = vmatprep.subr.bf16.mxu0 0
    %1214 = vmatpush1.bf16.msra.mxu0 0
    %1215 = vmatprep.mubr.bf16.mxu0 0
    %1216 = vmatmul.mubr.bf16.gmra.mrb[0].mxu0 %v1181
    %v1217 = vpop.f32.mrb[0].mxu0
    %v1218 = vadd.f32 0.0, %v1217
    %v1219 = vpop.f32.mrb[0].mxu0
    %v1220 = vadd.f32 0.0, %v1219
    %v1221 = vpop.f32.mrb[0].mxu0
    %v1222 = vpop.f32.mrb[0].mxu0
    %1223 = vdwg.mxu0
    %1224 = vmatprep.subr.bf16.mxu0 %v592
    %1225 = vmatpush1.bf16.msra.mxu0 %v591
    %1226 = vmatprep.subr.bf16.mxu0 %v596
    %1227 = vmatpush1.bf16.msra.mxu0 %v595
    %1228 = vmatprep.subr.bf16.mxu0 %v600
    %1229 = vmatpush1.bf16.msra.mxu0 %v599
    %1230 = vmatprep.subr.bf16.mxu0 %v604
    %1231 = vmatpush1.bf16.msra.mxu0 %v603
    %1232 = vmatprep.subr.bf16.mxu0 %v608
    %1233 = vmatpush1.bf16.msra.mxu0 %v607
    %1234 = vmatprep.subr.bf16.mxu0 %v612
    %1235 = vmatpush1.bf16.msra.mxu0 %v611
    %1236 = vmatprep.subr.bf16.mxu0 %v616
    %1237 = vmatpush1.bf16.msra.mxu0 %v615
    %1238 = vmatprep.subr.bf16.mxu0 %v620
    %1239 = vmatpush1.bf16.msra.mxu0 %v619
    %1240 = vmatprep.subr.bf16.mxu0 0
    %1241 = vmatpush1.bf16.msra.mxu0 0
    %1242 = vmatprep.subr.bf16.mxu0 0
    %1243 = vmatpush1.bf16.msra.mxu0 0
    %1244 = vmatprep.subr.bf16.mxu0 0
    %1245 = vmatpush1.bf16.msra.mxu0 0
    %1246 = vmatprep.subr.bf16.mxu0 0
    %1247 = vmatpush1.bf16.msra.mxu0 0
    %1248 = vmatprep.subr.bf16.mxu0 0
    %1249 = vmatpush1.bf16.msra.mxu0 0
    %1250 = vmatprep.subr.bf16.mxu0 0
    %1251 = vmatpush1.bf16.msra.mxu0 0
    %1252 = vmatprep.subr.bf16.mxu0 0
    %1253 = vmatpush1.bf16.msra.mxu0 0
    %1254 = vmatprep.subr.bf16.mxu0 0
    %1255 = vmatpush1.bf16.msra.mxu0 0
    %1256 = vmatprep.mubr.bf16.mxu0 0
    %1257 = vmatmul.mubr.bf16.gmra.mrb[0].mxu0 %v1181
    %v1258 = vpop.f32.mrb[0].mxu0
    %v1259 = vadd.f32 0.0, %v1258
    %v1260 = vpop.f32.mrb[0].mxu0
    %v1261 = vadd.f32 0.0, %v1260
    %v1262 = vpop.f32.mrb[0].mxu0
    %v1263 = vpop.f32.mrb[0].mxu0
    %1264 = vdwg.mxu0
    %v1265 = vadd.f32 %v371, %v1218
    %v1266 = vadd.f32 %v373, %v1220
    %v1267 = vadd.f32 %v444, %v1259
    %v1268 = vadd.f32 %v446, %v1261
    %v1269 = vmul.f32 %v1265, 0.5
    %v1270 = vtanh.pop %v1269
    %v1271 = vmul.f32 %v1270, 0.5
    %v1272 = vadd.f32 %v1271, 0.5
    %v1273 = vmul.f32 %v1266, 0.5
    %v1274 = vtanh.pop %v1273
    %v1275 = vmul.f32 %v1274, 0.5
    %v1276 = vadd.f32 %v1275, 0.5
    %v1277 = vtanh.pop %v1267
    %v1278 = vmul.f32 %v1268, 0.5
    %v1279 = vtanh.pop %v1278
    %v1280 = vmul.f32 %v1279, 0.5
    %v1281 = vadd.f32 %v1280, 0.5
    %v1282 = vmul.f32 %v1276, %v1178
    %v1283 = vmul.f32 %v1272, %v1277
    %v1284 = vadd.f32 %v1282, %v1283
    %v1285 = vtanh.pop %v1284
    %v1286 = vmul.f32 %v1281, %v1285
    %v1287 = vpack.c.bf16 %v1286, %v1286
    %1288 = vst [vmem:[#allocation10 + $0x14] sm:$0xf] %v1287
    %1289 = vmatprep.subr.bf16.mxu0 %v590
    %1290 = vmatpush1.bf16.msra.mxu0 %v589
    %1291 = vmatprep.subr.bf16.mxu0 %v594
    %1292 = vmatpush1.bf16.msra.mxu0 %v593
    %1293 = vmatprep.subr.bf16.mxu0 %v598
    %1294 = vmatpush1.bf16.msra.mxu0 %v597
    %1295 = vmatprep.subr.bf16.mxu0 %v602
    %1296 = vmatpush1.bf16.msra.mxu0 %v601
    %1297 = vmatprep.subr.bf16.mxu0 %v606
    %1298 = vmatpush1.bf16.msra.mxu0 %v605
    %1299 = vmatprep.subr.bf16.mxu0 %v610
    %1300 = vmatpush1.bf16.msra.mxu0 %v609
    %1301 = vmatprep.subr.bf16.mxu0 %v614
    %1302 = vmatpush1.bf16.msra.mxu0 %v613
    %1303 = vmatprep.subr.bf16.mxu0 %v618
    %1304 = vmatpush1.bf16.msra.mxu0 %v617
    %1305 = vmatprep.subr.bf16.mxu0 0
    %1306 = vmatpush1.bf16.msra.mxu0 0
    %1307 = vmatprep.subr.bf16.mxu0 0
    %1308 = vmatpush1.bf16.msra.mxu0 0
    %1309 = vmatprep.subr.bf16.mxu0 0
    %1310 = vmatpush1.bf16.msra.mxu0 0
    %1311 = vmatprep.subr.bf16.mxu0 0
    %1312 = vmatpush1.bf16.msra.mxu0 0
    %1313 = vmatprep.subr.bf16.mxu0 0
    %1314 = vmatpush1.bf16.msra.mxu0 0
    %1315 = vmatprep.subr.bf16.mxu0 0
    %1316 = vmatpush1.bf16.msra.mxu0 0
    %1317 = vmatprep.subr.bf16.mxu0 0
    %1318 = vmatpush1.bf16.msra.mxu0 0
    %1319 = vmatprep.subr.bf16.mxu0 0
    %1320 = vmatpush1.bf16.msra.mxu0 0
    %1321 = vmatprep.mubr.bf16.mxu0 0
    %1322 = vmatmul.mubr.bf16.gmra.mrb[0].mxu0 %v1287
    %v1323 = vpop.f32.mrb[0].mxu0
    %v1324 = vadd.f32 0.0, %v1323
    %v1325 = vpop.f32.mrb[0].mxu0
    %v1326 = vadd.f32 0.0, %v1325
    %v1327 = vpop.f32.mrb[0].mxu0
    %v1328 = vpop.f32.mrb[0].mxu0
    %1329 = vdwg.mxu0
    %1330 = vmatprep.subr.bf16.mxu0 %v592
    %1331 = vmatpush1.bf16.msra.mxu0 %v591
    %1332 = vmatprep.subr.bf16.mxu0 %v596
    %1333 = vmatpush1.bf16.msra.mxu0 %v595
    %1334 = vmatprep.subr.bf16.mxu0 %v600
    %1335 = vmatpush1.bf16.msra.mxu0 %v599
    %1336 = vmatprep.subr.bf16.mxu0 %v604
    %1337 = vmatpush1.bf16.msra.mxu0 %v603
    %1338 = vmatprep.subr.bf16.mxu0 %v608
    %1339 = vmatpush1.bf16.msra.mxu0 %v607
    %1340 = vmatprep.subr.bf16.mxu0 %v612
    %1341 = vmatpush1.bf16.msra.mxu0 %v611
    %1342 = vmatprep.subr.bf16.mxu0 %v616
    %1343 = vmatpush1.bf16.msra.mxu0 %v615
    %1344 = vmatprep.subr.bf16.mxu0 %v620
    %1345 = vmatpush1.bf16.msra.mxu0 %v619
    %1346 = vmatprep.subr.bf16.mxu0 0
    %1347 = vmatpush1.bf16.msra.mxu0 0
    %1348 = vmatprep.subr.bf16.mxu0 0
    %1349 = vmatpush1.bf16.msra.mxu0 0
    %1350 = vmatprep.subr.bf16.mxu0 0
    %1351 = vmatpush1.bf16.msra.mxu0 0
    %1352 = vmatprep.subr.bf16.mxu0 0
    %1353 = vmatpush1.bf16.msra.mxu0 0
    %1354 = vmatprep.subr.bf16.mxu0 0
    %1355 = vmatpush1.bf16.msra.mxu0 0
    %1356 = vmatprep.subr.bf16.mxu0 0
    %1357 = vmatpush1.bf16.msra.mxu0 0
    %1358 = vmatprep.subr.bf16.mxu0 0
    %1359 = vmatpush1.bf16.msra.mxu0 0
    %1360 = vmatprep.subr.bf16.mxu0 0
    %1361 = vmatpush1.bf16.msra.mxu0 0
    %1362 = vmatprep.mubr.bf16.mxu0 0
    %1363 = vmatmul.mubr.bf16.gmra.mrb[0].mxu0 %v1287
    %v1364 = vpop.f32.mrb[0].mxu0
    %v1365 = vadd.f32 0.0, %v1364
    %v1366 = vpop.f32.mrb[0].mxu0
    %v1367 = vadd.f32 0.0, %v1366
    %v1368 = vpop.f32.mrb[0].mxu0
    %v1369 = vpop.f32.mrb[0].mxu0
    %1370 = vdwg.mxu0
    %v1371 = vadd.f32 %v377, %v1324
    %v1372 = vadd.f32 %v379, %v1326
    %v1373 = vadd.f32 %v450, %v1365
    %v1374 = vadd.f32 %v452, %v1367
    %v1375 = vmul.f32 %v1371, 0.5
    %v1376 = vtanh.pop %v1375
    %v1377 = vmul.f32 %v1376, 0.5
    %v1378 = vadd.f32 %v1377, 0.5
    %v1379 = vmul.f32 %v1372, 0.5
    %v1380 = vtanh.pop %v1379
    %v1381 = vmul.f32 %v1380, 0.5
    %v1382 = vadd.f32 %v1381, 0.5
    %v1383 = vtanh.pop %v1373
    %v1384 = vmul.f32 %v1374, 0.5
    %v1385 = vtanh.pop %v1384
    %v1386 = vmul.f32 %v1385, 0.5
    %v1387 = vadd.f32 %v1386, 0.5
    %v1388 = vmul.f32 %v1382, %v1284
    %v1389 = vmul.f32 %v1378, %v1383
    %v1390 = vadd.f32 %v1388, %v1389
    %v1391 = vtanh.pop %v1390
    %v1392 = vmul.f32 %v1387, %v1391
    %v1393 = vpack.c.bf16 %v1392, %v1392
    %1394 = vst [vmem:[#allocation10 + $0x18] sm:$0xf] %v1393
    %1395 = vmatprep.subr.bf16.mxu0 %v590
    %1396 = vmatpush1.bf16.msra.mxu0 %v589
    %1397 = vmatprep.subr.bf16.mxu0 %v594
    %1398 = vmatpush1.bf16.msra.mxu0 %v593
    %1399 = vmatprep.subr.bf16.mxu0 %v598
    %1400 = vmatpush1.bf16.msra.mxu0 %v597
    %1401 = vmatprep.subr.bf16.mxu0 %v602
    %1402 = vmatpush1.bf16.msra.mxu0 %v601
    %1403 = vmatprep.subr.bf16.mxu0 %v606
    %1404 = vmatpush1.bf16.msra.mxu0 %v605
    %1405 = vmatprep.subr.bf16.mxu0 %v610
    %1406 = vmatpush1.bf16.msra.mxu0 %v609
    %1407 = vmatprep.subr.bf16.mxu0 %v614
    %1408 = vmatpush1.bf16.msra.mxu0 %v613
    %1409 = vmatprep.subr.bf16.mxu0 %v618
    %1410 = vmatpush1.bf16.msra.mxu0 %v617
    %1411 = vmatprep.subr.bf16.mxu0 0
    %1412 = vmatpush1.bf16.msra.mxu0 0
    %1413 = vmatprep.subr.bf16.mxu0 0
    %1414 = vmatpush1.bf16.msra.mxu0 0
    %1415 = vmatprep.subr.bf16.mxu0 0
    %1416 = vmatpush1.bf16.msra.mxu0 0
    %1417 = vmatprep.subr.bf16.mxu0 0
    %1418 = vmatpush1.bf16.msra.mxu0 0
    %1419 = vmatprep.subr.bf16.mxu0 0
    %1420 = vmatpush1.bf16.msra.mxu0 0
    %1421 = vmatprep.subr.bf16.mxu0 0
    %1422 = vmatpush1.bf16.msra.mxu0 0
    %1423 = vmatprep.subr.bf16.mxu0 0
    %1424 = vmatpush1.bf16.msra.mxu0 0
    %1425 = vmatprep.subr.bf16.mxu0 0
    %1426 = vmatpush1.bf16.msra.mxu0 0
    %1427 = vmatprep.mubr.bf16.mxu0 0
    %1428 = vmatmul.mubr.bf16.gmra.mrb[0].mxu0 %v1393
    %v1429 = vpop.f32.mrb[0].mxu0
    %v1430 = vadd.f32 0.0, %v1429
    %v1431 = vpop.f32.mrb[0].mxu0
    %v1432 = vadd.f32 0.0, %v1431
    %v1433 = vpop.f32.mrb[0].mxu0
    %v1434 = vpop.f32.mrb[0].mxu0
    %1435 = vdwg.mxu0
    %1436 = vmatprep.subr.bf16.mxu0 %v592
    %1437 = vmatpush1.bf16.msra.mxu0 %v591
    %1438 = vmatprep.subr.bf16.mxu0 %v596
    %1439 = vmatpush1.bf16.msra.mxu0 %v595
    %1440 = vmatprep.subr.bf16.mxu0 %v600
    %1441 = vmatpush1.bf16.msra.mxu0 %v599
    %1442 = vmatprep.subr.bf16.mxu0 %v604
    %1443 = vmatpush1.bf16.msra.mxu0 %v603
    %1444 = vmatprep.subr.bf16.mxu0 %v608
    %1445 = vmatpush1.bf16.msra.mxu0 %v607
    %1446 = vmatprep.subr.bf16.mxu0 %v612
    %1447 = vmatpush1.bf16.msra.mxu0 %v611
    %1448 = vmatprep.subr.bf16.mxu0 %v616
    %1449 = vmatpush1.bf16.msra.mxu0 %v615
    %1450 = vmatprep.subr.bf16.mxu0 %v620
    %1451 = vmatpush1.bf16.msra.mxu0 %v619
    %1452 = vmatprep.subr.bf16.mxu0 0
    %1453 = vmatpush1.bf16.msra.mxu0 0
    %1454 = vmatprep.subr.bf16.mxu0 0
    %1455 = vmatpush1.bf16.msra.mxu0 0
    %1456 = vmatprep.subr.bf16.mxu0 0
    %1457 = vmatpush1.bf16.msra.mxu0 0
    %1458 = vmatprep.subr.bf16.mxu0 0
    %1459 = vmatpush1.bf16.msra.mxu0 0
    %1460 = vmatprep.subr.bf16.mxu0 0
    %1461 = vmatpush1.bf16.msra.mxu0 0
    %1462 = vmatprep.subr.bf16.mxu0 0
    %1463 = vmatpush1.bf16.msra.mxu0 0
    %1464 = vmatprep.subr.bf16.mxu0 0
    %1465 = vmatpush1.bf16.msra.mxu0 0
    %1466 = vmatprep.subr.bf16.mxu0 0
    %1467 = vmatpush1.bf16.msra.mxu0 0
    %1468 = vmatprep.mubr.bf16.mxu0 0
    %1469 = vmatmul.mubr.bf16.gmra.mrb[0].mxu0 %v1393
    %v1470 = vpop.f32.mrb[0].mxu0
    %v1471 = vadd.f32 0.0, %v1470
    %v1472 = vpop.f32.mrb[0].mxu0
    %v1473 = vadd.f32 0.0, %v1472
    %v1474 = vpop.f32.mrb[0].mxu0
    %v1475 = vpop.f32.mrb[0].mxu0
    %1476 = vdwg.mxu0
    %v1477 = vadd.f32 %v381, %v1430
    %v1478 = vadd.f32 %v383, %v1432
    %v1479 = vadd.f32 %v454, %v1471
    %v1480 = vadd.f32 %v456, %v1473
    %v1481 = vmul.f32 %v1477, 0.5
    %v1482 = vtanh.pop %v1481
    %v1483 = vmul.f32 %v1482, 0.5
    %v1484 = vadd.f32 %v1483, 0.5
    %v1485 = vmul.f32 %v1478, 0.5
    %v1486 = vtanh.pop %v1485
    %v1487 = vmul.f32 %v1486, 0.5
    %v1488 = vadd.f32 %v1487, 0.5
    %v1489 = vtanh.pop %v1479
    %v1490 = vmul.f32 %v1480, 0.5
    %v1491 = vtanh.pop %v1490
    %v1492 = vmul.f32 %v1491, 0.5
    %v1493 = vadd.f32 %v1492, 0.5
    %v1494 = vmul.f32 %v1488, %v1390
    %v1495 = vmul.f32 %v1484, %v1489
    %v1496 = vadd.f32 %v1494, %v1495
    %v1497 = vtanh.pop %v1496
    %v1498 = vmul.f32 %v1493, %v1497
    %v1499 = vpack.c.bf16 %v1498, %v1498
    %1500 = vst [vmem:[#allocation10 + $0x1c] sm:$0xf] %v1499
    %1501 = vst [vmem:[#allocation2] sm:$0xff] %v1498
    %1502 = vst [vmem:[#allocation3] sm:$0xff] %v1496
    // Predicated region
    $region34: #{tpu_custom_call.1} parent=1 // pred_check
      _
    $region35: #{tpu_custom_call.1} parent=1 // pred_check_branch
      %1504 = sbr.rel (0) target = $region37
    $region36: #{tpu_custom_call.1} parent=1 // pred_region
      %s1506 = ssub.s32 512, 512
      %1507 = vsyncadd [#allocation6], %s1506
      %s1508 = sshll.u32 [#allocation10], 4
      %s1509 = int_to_ptr.vmem [resolvable:$true] %s1508
      %1514 = dma.vmem_to_hbm [thread:$0]  %s1509, 512, %s4, [#allocation6], 64, 64, 4
    $region37: #{tpu_custom_call.1} parent=1 // pred_fallthru
      _
    // Predicated region
    $region38: #{tpu_custom_call.1} parent=1 // pred_check
      _
    $region39: #{tpu_custom_call.1} parent=1 // pred_check_branch
      %1516 = sbr.rel (0) target = $region41
    $region40: #{tpu_custom_call.1} parent=1 // pred_region
      %1517 = dma.done [#allocation6], 512
    $region41: #{tpu_custom_call.1} parent=1 // pred_fallthru
      _
    %1518 = vsyncpa [#allocation5], 1
    %1519 = vsyncpa [#allocation8], 1
    %1520 = vsyncpa [#allocation6], 1

</llo_original>
